<compile_context>
chip_gen: v7x
topology: tpu7x:2x2x1
jax: 0.10.0
libtpu: 0.0.40
codegen_flags: <defaults>
</compile_context>

<pallas_src>
import jax
import jax.numpy as jnp
from jax.experimental import pallas as pl
from jax.experimental.pallas import tpu as pltpu

NEG_SLOPE = 0.01   # torch.nn.LeakyReLU default negative_slope
LANE = 128         # TPU lane width


def _round_up(x, m):
    return ((x + m - 1) // m) * m


def mlp_q_kernel(*refs):
    """refs = (x_ref, w0, b0, w1, b1, ..., wL, bL, out_ref).

    Processes one (TB, obs_dim) batch tile through the whole MLP:
    LeakyReLU(0.01) hidden layers, Tanh output layer.
    """
    x_ref, out_ref = refs[0], refs[-1]
    param_refs = refs[1:-1]
    n_layers = len(param_refs) // 2

    h = x_ref[...].astype(jnp.bfloat16)                  # bf16 MXU operand
    for j in range(n_layers):
        w = param_refs[2 * j][...]                       # bf16 (in, out), VMEM-resident
        b = param_refs[2 * j + 1][...]                   # f32  (1, out)
        z = jnp.dot(h, w, preferred_element_type=jnp.float32) + b
        if j < n_layers - 1:
            a = jnp.where(z >= 0, z, NEG_SLOPE * z)      # LeakyReLU in f32 (VPU)
            h = a.astype(jnp.bfloat16)                   # back to bf16 for next dot
        else:
            # Tanh output; out width is a multiple of 128 -> lane-dense store.
            out_ref[...] = jnp.tanh(z).astype(out_ref.dtype)


def init_mlp_params(key, sizes):
    """Deterministic params mimicking nn.Linear default init:
    U(-1/sqrt(fan_in), 1/sqrt(fan_in)).  W is (in_features, out_features)."""
    params = []
    for j in range(len(sizes) - 1):
        fan_in, fan_out = sizes[j], sizes[j + 1]
        key, kw, kb = jax.random.split(key, 3)
        bound = 1.0 / jnp.sqrt(jnp.float32(fan_in))
        w = jax.random.uniform(kw, (fan_in, fan_out), jnp.float32, -bound, bound)
        b = jax.random.uniform(kb, (1, fan_out), jnp.float32, -bound, bound)
        params.append((w, b))
    return params


def prepare_params(params):
    """Pad every layer's out_features (and the next layer's in_features) to a
    multiple of 128 and cast weights to bf16.  Padded columns get zero
    weights/bias and the next layer's padded input rows are zero, so results
    are unchanged; the final Q columns are sliced off in the wrapper."""
    prepped = []
    prev_pad = 0
    for w, b in params:
        fin, fout = w.shape
        fout_p = _round_up(fout, LANE)
        w_p = jnp.zeros((fin + prev_pad, fout_p), jnp.float32).at[:fin, :fout].set(w)
        b_p = jnp.zeros((1, fout_p), jnp.float32).at[:, :fout].set(b)
        prepped.append((w_p.astype(jnp.bfloat16), b_p))
        prev_pad = fout_p - fout
    return prepped


def mlp_q_forward(obs, prepped_params, act_dim, *, tb=128):
    """Pallas forward for MLPQFunction: obs (batch, obs_dim) -> q (batch, act_dim)."""
    batch, obs_dim = obs.shape
    out_pad = prepped_params[-1][0].shape[1]

    tb = min(tb, _round_up(batch, 8))          # batch tile rows, multiple of 8
    grid = (pl.cdiv(batch, tb),)

    flat_inputs = [obs]
    in_specs = [pl.BlockSpec((tb, obs_dim), lambda i: (i, 0))]
    for w, b in prepped_params:
        flat_inputs += [w, b]
        # Constant block index -> DMA'd once, stays VMEM-resident across tiles.
        in_specs += [
            pl.BlockSpec(w.shape, lambda i: (0, 0)),
            pl.BlockSpec(b.shape, lambda i: (0, 0)),
        ]

    out_padded = pl.pallas_call(
        mlp_q_kernel,
        out_shape=jax.ShapeDtypeStruct((batch, out_pad), jnp.float32),
        grid=grid,
        in_specs=in_specs,
        out_specs=pl.BlockSpec((tb, out_pad), lambda i: (i, 0)),
        compiler_params=pltpu.CompilerParams(
            dimension_semantics=("parallel",),   # batch tiles shard over v7x's 2 TCs
        ),
    )(*flat_inputs)
    return out_padded[:, :act_dim]


def reference_forward(obs, params):
    """Pure-JAX f32 reference mirroring the torch module's semantics."""
    h = obs
    n = len(params)
    for j, (w, b) in enumerate(params):
        z = h @ w + b
        if j < n - 1:
            h = jnp.where(z >= 0, z, NEG_SLOPE * z)
        else:
            h = jnp.tanh(z)
    return h


if __name__ == "__main__":
    # Shapes consistent with MLPQFunction(obs_dim, act_dim, hidden_sizes=(256,)*4).
    batch, obs_dim, act_dim = 256, 24, 6
    hidden_sizes = (256, 256, 256, 256)          # module default
    sizes = [obs_dim] + list(hidden_sizes) + [act_dim]

    key = jax.random.PRNGKey(0)
    key, k_obs = jax.random.split(key)
    obs = jax.random.normal(k_obs, (batch, obs_dim), jnp.float32)

    params = init_mlp_params(key, sizes)
    prepped = prepare_params(params)

    q = mlp_q_forward(obs, prepped, act_dim)
    q = jax.block_until_ready(q)

    q_ref = reference_forward(obs, params)
    assert q.shape == (batch, act_dim)
    # bf16 MXU operands with f32 accumulation -> loosened tolerance vs pure-f32 reference.
    err = float(jnp.max(jnp.abs(q - q_ref)))
    assert jnp.allclose(q, q_ref, atol=3e-2, rtol=3e-2), f"max abs err {err}"

    # TODO(synk): save()/load() checkpoint I/O and train()/eval() mode toggles have
    # no kernel equivalent (and no effect on this forward: no dropout/batchnorm).

    print("KERNEL_OK")
</pallas_src>

<mosaic_0001>
module attributes {stable_mosaic.version = 11 : i64} {
  func.func @mlp_q_kernel(%arg0: i32, %arg1: memref<128x24xf32, #tpu.memory_space<vmem>>, %arg2: memref<24x256xbf16, #tpu.memory_space<vmem>>, %arg3: memref<1x256xf32, #tpu.memory_space<vmem>>, %arg4: memref<256x256xbf16, #tpu.memory_space<vmem>>, %arg5: memref<1x256xf32, #tpu.memory_space<vmem>>, %arg6: memref<256x256xbf16, #tpu.memory_space<vmem>>, %arg7: memref<1x256xf32, #tpu.memory_space<vmem>>, %arg8: memref<256x256xbf16, #tpu.memory_space<vmem>>, %arg9: memref<1x256xf32, #tpu.memory_space<vmem>>, %arg10: memref<256x128xbf16, #tpu.memory_space<vmem>>, %arg11: memref<1x128xf32, #tpu.memory_space<vmem>>, %arg12: memref<128x128xf32, #tpu.memory_space<vmem>>) attributes {dimension_semantics = [#tpu.dimension_semantics<parallel>], iteration_bounds = array<i64: 2>, scalar_prefetch = 0 : i64, scratch_operands = 0 : i64, tpu.core_type = #tpu.core_type<tc>, window_params = [{transform_indices = @transform_0, window_bounds = array<i64: 128, 24>}, {pipeline_mode = #tpu.pipeline_mode<synchronous>, transform_indices = @transform_1, window_bounds = array<i64: 24, 256>}, {pipeline_mode = #tpu.pipeline_mode<synchronous>, transform_indices = @transform_2, window_bounds = array<i64: 1, 256>}, {pipeline_mode = #tpu.pipeline_mode<synchronous>, transform_indices = @transform_3, window_bounds = array<i64: 256, 256>}, {pipeline_mode = #tpu.pipeline_mode<synchronous>, transform_indices = @transform_4, window_bounds = array<i64: 1, 256>}, {pipeline_mode = #tpu.pipeline_mode<synchronous>, transform_indices = @transform_5, window_bounds = array<i64: 256, 256>}, {pipeline_mode = #tpu.pipeline_mode<synchronous>, transform_indices = @transform_6, window_bounds = array<i64: 1, 256>}, {pipeline_mode = #tpu.pipeline_mode<synchronous>, transform_indices = @transform_7, window_bounds = array<i64: 256, 256>}, {pipeline_mode = #tpu.pipeline_mode<synchronous>, transform_indices = @transform_8, window_bounds = array<i64: 1, 256>}, {pipeline_mode = #tpu.pipeline_mode<synchronous>, transform_indices = @transform_9, window_bounds = array<i64: 256, 128>}, {pipeline_mode = #tpu.pipeline_mode<synchronous>, transform_indices = @transform_10, window_bounds = array<i64: 1, 128>}, {transform_indices = @transform_11, window_bounds = array<i64: 128, 128>}]} {
    %c0 = arith.constant 0 : index
    %c0_0 = arith.constant 0 : index
    %0 = vector.load %arg1[%c0, %c0_0] : memref<128x24xf32, #tpu.memory_space<vmem>>, vector<128x24xf32>
    %1 = arith.truncf %0 : vector<128x24xf32> to vector<128x24xbf16>
    %c0_1 = arith.constant 0 : index
    %c0_2 = arith.constant 0 : index
    %2 = vector.load %arg2[%c0_1, %c0_2] : memref<24x256xbf16, #tpu.memory_space<vmem>>, vector<24x256xbf16>
    %c0_3 = arith.constant 0 : index
    %c0_4 = arith.constant 0 : index
    %3 = vector.load %arg3[%c0_3, %c0_4] : memref<1x256xf32, #tpu.memory_space<vmem>>, vector<1x256xf32>
    %cst = arith.constant dense<0.000000e+00> : vector<128x256xf32>
    %4 = tpu.matmul %1, %2, %cst {dimension_numbers = #tpu.dot_dimension_numbers<[1], [0], [0], [1], [0, 0, 1, 1], [], []>} : vector<128x24xbf16>, vector<24x256xbf16>, vector<128x256xf32> -> vector<128x256xf32>
    %5 = vector.broadcast %3 : vector<1x256xf32> to vector<128x256xf32>
    %6 = arith.addf %4, %5 : vector<128x256xf32>
    %cst_5 = arith.constant 0.000000e+00 : f32
    %7 = vector.broadcast %cst_5 : f32 to vector<128x256xf32>
    %8 = arith.cmpf oge, %6, %7 : vector<128x256xf32>
    %cst_6 = arith.constant 0.00999999977 : f32
    %9 = vector.broadcast %cst_6 : f32 to vector<128x256xf32>
    %10 = arith.mulf %9, %6 : vector<128x256xf32>
    %11 = arith.select %8, %6, %10 : vector<128x256xi1>, vector<128x256xf32>
    %12 = arith.truncf %11 : vector<128x256xf32> to vector<128x256xbf16>
    %c0_7 = arith.constant 0 : index
    %c0_8 = arith.constant 0 : index
    %13 = vector.load %arg4[%c0_7, %c0_8] : memref<256x256xbf16, #tpu.memory_space<vmem>>, vector<256x256xbf16>
    %c0_9 = arith.constant 0 : index
    %c0_10 = arith.constant 0 : index
    %14 = vector.load %arg5[%c0_9, %c0_10] : memref<1x256xf32, #tpu.memory_space<vmem>>, vector<1x256xf32>
    %cst_11 = arith.constant dense<0.000000e+00> : vector<128x256xf32>
    %15 = tpu.matmul %12, %13, %cst_11 {dimension_numbers = #tpu.dot_dimension_numbers<[1], [0], [0], [1], [0, 0, 1, 1], [], []>} : vector<128x256xbf16>, vector<256x256xbf16>, vector<128x256xf32> -> vector<128x256xf32>
    %16 = vector.broadcast %14 : vector<1x256xf32> to vector<128x256xf32>
    %17 = arith.addf %15, %16 : vector<128x256xf32>
    %cst_12 = arith.constant 0.000000e+00 : f32
    %18 = vector.broadcast %cst_12 : f32 to vector<128x256xf32>
    %19 = arith.cmpf oge, %17, %18 : vector<128x256xf32>
    %cst_13 = arith.constant 0.00999999977 : f32
    %20 = vector.broadcast %cst_13 : f32 to vector<128x256xf32>
    %21 = arith.mulf %20, %17 : vector<128x256xf32>
    %22 = arith.select %19, %17, %21 : vector<128x256xi1>, vector<128x256xf32>
    %23 = arith.truncf %22 : vector<128x256xf32> to vector<128x256xbf16>
    %c0_14 = arith.constant 0 : index
    %c0_15 = arith.constant 0 : index
    %24 = vector.load %arg6[%c0_14, %c0_15] : memref<256x256xbf16, #tpu.memory_space<vmem>>, vector<256x256xbf16>
    %c0_16 = arith.constant 0 : index
    %c0_17 = arith.constant 0 : index
    %25 = vector.load %arg7[%c0_16, %c0_17] : memref<1x256xf32, #tpu.memory_space<vmem>>, vector<1x256xf32>
    %cst_18 = arith.constant dense<0.000000e+00> : vector<128x256xf32>
    %26 = tpu.matmul %23, %24, %cst_18 {dimension_numbers = #tpu.dot_dimension_numbers<[1], [0], [0], [1], [0, 0, 1, 1], [], []>} : vector<128x256xbf16>, vector<256x256xbf16>, vector<128x256xf32> -> vector<128x256xf32>
    %27 = vector.broadcast %25 : vector<1x256xf32> to vector<128x256xf32>
    %28 = arith.addf %26, %27 : vector<128x256xf32>
    %cst_19 = arith.constant 0.000000e+00 : f32
    %29 = vector.broadcast %cst_19 : f32 to vector<128x256xf32>
    %30 = arith.cmpf oge, %28, %29 : vector<128x256xf32>
    %cst_20 = arith.constant 0.00999999977 : f32
    %31 = vector.broadcast %cst_20 : f32 to vector<128x256xf32>
    %32 = arith.mulf %31, %28 : vector<128x256xf32>
    %33 = arith.select %30, %28, %32 : vector<128x256xi1>, vector<128x256xf32>
    %34 = arith.truncf %33 : vector<128x256xf32> to vector<128x256xbf16>
    %c0_21 = arith.constant 0 : index
    %c0_22 = arith.constant 0 : index
    %35 = vector.load %arg8[%c0_21, %c0_22] : memref<256x256xbf16, #tpu.memory_space<vmem>>, vector<256x256xbf16>
    %c0_23 = arith.constant 0 : index
    %c0_24 = arith.constant 0 : index
    %36 = vector.load %arg9[%c0_23, %c0_24] : memref<1x256xf32, #tpu.memory_space<vmem>>, vector<1x256xf32>
    %cst_25 = arith.constant dense<0.000000e+00> : vector<128x256xf32>
    %37 = tpu.matmul %34, %35, %cst_25 {dimension_numbers = #tpu.dot_dimension_numbers<[1], [0], [0], [1], [0, 0, 1, 1], [], []>} : vector<128x256xbf16>, vector<256x256xbf16>, vector<128x256xf32> -> vector<128x256xf32>
    %38 = vector.broadcast %36 : vector<1x256xf32> to vector<128x256xf32>
    %39 = arith.addf %37, %38 : vector<128x256xf32>
    %cst_26 = arith.constant 0.000000e+00 : f32
    %40 = vector.broadcast %cst_26 : f32 to vector<128x256xf32>
    %41 = arith.cmpf oge, %39, %40 : vector<128x256xf32>
    %cst_27 = arith.constant 0.00999999977 : f32
    %42 = vector.broadcast %cst_27 : f32 to vector<128x256xf32>
    %43 = arith.mulf %42, %39 : vector<128x256xf32>
    %44 = arith.select %41, %39, %43 : vector<128x256xi1>, vector<128x256xf32>
    %45 = arith.truncf %44 : vector<128x256xf32> to vector<128x256xbf16>
    %c0_28 = arith.constant 0 : index
    %c0_29 = arith.constant 0 : index
    %46 = vector.load %arg10[%c0_28, %c0_29] : memref<256x128xbf16, #tpu.memory_space<vmem>>, vector<256x128xbf16>
    %c0_30 = arith.constant 0 : index
    %c0_31 = arith.constant 0 : index
    %47 = vector.load %arg11[%c0_30, %c0_31] : memref<1x128xf32, #tpu.memory_space<vmem>>, vector<1x128xf32>
    %cst_32 = arith.constant dense<0.000000e+00> : vector<128x128xf32>
    %48 = tpu.matmul %45, %46, %cst_32 {dimension_numbers = #tpu.dot_dimension_numbers<[1], [0], [0], [1], [0, 0, 1, 1], [], []>} : vector<128x256xbf16>, vector<256x128xbf16>, vector<128x128xf32> -> vector<128x128xf32>
    %49 = vector.broadcast %47 : vector<1x128xf32> to vector<128x128xf32>
    %50 = arith.addf %48, %49 : vector<128x128xf32>
    %51 = math.tanh %50 : vector<128x128xf32>
    %c0_33 = arith.constant 0 : index
    %c0_34 = arith.constant 0 : index
    %52 = vector.load %arg12[%c0_33, %c0_34] : memref<128x128xf32, #tpu.memory_space<vmem>>, vector<128x128xf32>
    tpu.vector_store %arg12[%c0_33, %c0_34], %51 {strides = array<i32>} : memref<128x128xf32, #tpu.memory_space<vmem>>, vector<128x128xf32>,
    return
  }
  func.func @transform_0(%arg0: i32) -> (i32, i32) {
    %c0_i32 = arith.constant 0 : i32
    %c0_i32_0 = arith.constant 0 : i32
    return %arg0, %c0_i32 : i32, i32
  }
  func.func @transform_1(%arg0: i32) -> (i32, i32) {
    %c0_i32 = arith.constant 0 : i32
    %c0_i32_0 = arith.constant 0 : i32
    %c0_i32_1 = arith.constant 0 : i32
    return %c0_i32, %c0_i32_0 : i32, i32
  }
  func.func @transform_2(%arg0: i32) -> (i32, i32) {
    %c0_i32 = arith.constant 0 : i32
    %c0_i32_0 = arith.constant 0 : i32
    %c0_i32_1 = arith.constant 0 : i32
    return %c0_i32, %c0_i32_0 : i32, i32
  }
  func.func @transform_3(%arg0: i32) -> (i32, i32) {
    %c0_i32 = arith.constant 0 : i32
    %c0_i32_0 = arith.constant 0 : i32
    %c0_i32_1 = arith.constant 0 : i32
    return %c0_i32, %c0_i32_0 : i32, i32
  }
  func.func @transform_4(%arg0: i32) -> (i32, i32) {
    %c0_i32 = arith.constant 0 : i32
    %c0_i32_0 = arith.constant 0 : i32
    %c0_i32_1 = arith.constant 0 : i32
    return %c0_i32, %c0_i32_0 : i32, i32
  }
  func.func @transform_5(%arg0: i32) -> (i32, i32) {
    %c0_i32 = arith.constant 0 : i32
    %c0_i32_0 = arith.constant 0 : i32
    %c0_i32_1 = arith.constant 0 : i32
    return %c0_i32, %c0_i32_0 : i32, i32
  }
  func.func @transform_6(%arg0: i32) -> (i32, i32) {
    %c0_i32 = arith.constant 0 : i32
    %c0_i32_0 = arith.constant 0 : i32
    %c0_i32_1 = arith.constant 0 : i32
    return %c0_i32, %c0_i32_0 : i32, i32
  }
  func.func @transform_7(%arg0: i32) -> (i32, i32) {
    %c0_i32 = arith.constant 0 : i32
    %c0_i32_0 = arith.constant 0 : i32
    %c0_i32_1 = arith.constant 0 : i32
    return %c0_i32, %c0_i32_0 : i32, i32
  }
  func.func @transform_8(%arg0: i32) -> (i32, i32) {
    %c0_i32 = arith.constant 0 : i32
    %c0_i32_0 = arith.constant 0 : i32
    %c0_i32_1 = arith.constant 0 : i32
    return %c0_i32, %c0_i32_0 : i32, i32
  }
  func.func @transform_9(%arg0: i32) -> (i32, i32) {
    %c0_i32 = arith.constant 0 : i32
    %c0_i32_0 = arith.constant 0 : i32
    %c0_i32_1 = arith.constant 0 : i32
    return %c0_i32, %c0_i32_0 : i32, i32
  }
  func.func @transform_10(%arg0: i32) -> (i32, i32) {
    %c0_i32 = arith.constant 0 : i32
    %c0_i32_0 = arith.constant 0 : i32
    %c0_i32_1 = arith.constant 0 : i32
    return %c0_i32, %c0_i32_0 : i32, i32
  }
  func.func @transform_11(%arg0: i32) -> (i32, i32) {
    %c0_i32 = arith.constant 0 : i32
    %c0_i32_0 = arith.constant 0 : i32
    return %arg0, %c0_i32 : i32, i32
  }
}

</mosaic_0001>

<llo_original>
// kernel: tpu_custom_call.1
$region0: #{tpu_custom_call.1}
  #allocation0 [shape = 'u32[]', space=smem, size = 0x4, offset = 0x4, fixed_abs, tag = 'smem constant byte address 0x4 - core index']
  #allocation1 [shape = 'u32[144,128]{1,0:T(1,128)}', space=vmem, size = 0x12000, scoped, tag = 'internal scratch']
  %s0 = inlined_call_operand.vmem [shape: f32[256,24], index: 0, kind: input, shape index: {}]
  %s1 = inlined_call_operand.vmem [shape: bf16[24,256], index: 1, kind: input, shape index: {}]
  %s2 = inlined_call_operand.vmem [shape: f32[1,256], index: 2, kind: input, shape index: {}]
  %s3 = inlined_call_operand.vmem [shape: bf16[256,256], index: 3, kind: input, shape index: {}]
  %s4 = inlined_call_operand.vmem [shape: f32[1,256], index: 4, kind: input, shape index: {}]
  %s5 = inlined_call_operand.hbm [shape: bf16[256,256], index: 5, kind: input, shape index: {}]
  %s6 = inlined_call_operand.vmem [shape: f32[1,256], index: 6, kind: input, shape index: {}]
  %s7 = inlined_call_operand.hbm [shape: bf16[256,256], index: 7, kind: input, shape index: {}]
  %s8 = inlined_call_operand.vmem [shape: f32[1,256], index: 8, kind: input, shape index: {}]
  %s9 = inlined_call_operand.hbm [shape: bf16[256,128], index: 9, kind: input, shape index: {}]
  %s10 = inlined_call_operand.vmem [shape: f32[1,128], index: 10, kind: input, shape index: {}]
  %s11 = inlined_call_operand.hbm [shape: f32[256,128], index: 11, kind: output, shape index: {}]
  %s12 = sld [smem:[#allocation0]]
  $region89: #{tpu_custom_call.1} parent=0
    _
  %s14 = ssub.s32 1, %s12
  %s15 = scalar_select 0, %s14, %s12
  $region1: #{tpu_custom_call.1} parent=0
    #allocation2 [shape = 'u8[131072]{0}', space=vmem, size = 0x20000, scoped, tag = 'input window, operand 5, single buffered']
    #allocation3 [shape = 's32[2]{0}', space=sflag, size = 0x8, scoped, tag = 'scoped memory for tpu_custom_call.1']
    #allocation4 [shape = 's32[2]{0}', space=sflag, size = 0x8, scoped, tag = 'scoped memory for tpu_custom_call.1']
    #allocation5 [shape = 'u8[131072]{0}', space=vmem, size = 0x20000, scoped, tag = 'input window, operand 7, single buffered']
    #allocation6 [shape = 's32[1]{0}', space=sflag, size = 0x4, scoped, tag = 'scoped memory for tpu_custom_call.1']
    #allocation7 [shape = 'u8[65536]{0}', space=vmem, size = 0x10000, scoped, tag = 'input window, operand 9, single buffered']
    #allocation8 [shape = 'u8[131072]{0}', space=vmem, size = 0x20000, scoped, tag = 'output window, operand 0']
    %16 = vsyncpa [#allocation3], 0
    %17 = vsyncpa [#allocation6], 0
    %18 = vsyncpa [#allocation4], 0
    %s19 = scalar_lea.sflag [#allocation4], 1
    %20 = vsyncpa %s19, 0
    loop: start=0, step=1, limit=4
    $region2: #{tpu_custom_call.1} parent=1 // loop_pre_header
      _
    $region3: #{tpu_custom_call.1} parent=1 // loop_header
      %s22 = sphi 0, %s26
      %p23 = scmp.ge.s32.totalorder %s22, 4
      %s32 = sphi 0, %s34
      %s35 = sphi 0, %s32
      %s36 = sphi 0, %s35
      %s52 = sphi 0, %s36
      %s56 = sphi 0, %s56
      %s58 = sphi 0, %s56
      %s59 = sphi 0, %s58
      %s73 = sphi 0, %s59
      %s77 = sphi 0, %s77
      %s79 = sphi 0, %s77
      %s80 = sphi 0, %s79
      %s94 = sphi 0, %s80
      %s98 = sphi 0, %s98
      %s100 = sphi 0, %s98
      %s101 = sphi 0, %s100
      %s115 = sphi 0, %s101
      %s119 = sphi 0, %s119
      %s121 = sphi 0, %s119
      %s122 = sphi 0, %s121
      %s136 = sphi 0, %s122
      %s140 = sphi 0, %s140
      %s142 = sphi 0, %s140
      %s143 = sphi 0, %s142
      %s157 = sphi 0, %s143
      %s161 = sphi 0, %s161
      %s163 = sphi 0, %s161
      %s164 = sphi 0, %s163
      %s178 = sphi 0, %s164
      %s182 = sphi 0, %s182
      %s184 = sphi 0, %s182
      %s185 = sphi 0, %s184
      %s199 = sphi 0, %s185
      %s203 = sphi 0, %s203
      %s205 = sphi 0, %s203
      %s206 = sphi 0, %s205
      %s220 = sphi 0, %s206
      %s224 = sphi 0, %s224
      %s226 = sphi 0, %s224
      %s227 = sphi 0, %s226
      %s241 = sphi 0, %s227
      %s245 = sphi 0, %s245
      %s247 = sphi 0, %s245
      %s248 = sphi 0, %s247
      %s262 = sphi 0, %s248
      %s268 = sphi 0, %s270
      %s271 = sphi 0, %s268
      %s272 = sphi 0, %s271
      %s288 = sphi 0, %s272
    $region4: #{tpu_custom_call.1} parent=1 // loop_header_branch
      %25 = sbr.rel (%p23) target = $region8
    $region5: #{tpu_custom_call.1} parent=1 // loop_body
      %s27 = ssub.s32 %s22, 1
      %s28 = ssub.s32 %s22, 2
      %s29 = sadd.s32 %s22, 1
      %s30 = ssub.s32 %s22, %s29
      %p31 = scmp.eq.s32.totalorder %s30, 0
      %s33 = sadd.s32 %s32, 1
      %s34 = scalar_select %p31, %s32, %s33
      %p37 = pneg %p31
      %p38 = scmp.eq.s32.totalorder %s22, 1
      %p39 = por %p37, %p38
      %p40 = scmp.ne.s32.totalorder %s32, %s35
      %p41 = scmp.eq.s32.totalorder %s22, 0
      %p42 = por %p40, %p41
      %p43 = scmp.ne.s32.totalorder %s32, %s35
      %p44 = scmp.eq.s32.totalorder %s27, 1
      %p45 = por %p43, %p44
      %p46 = scmp.ne.s32.totalorder %s35, %s36
      %p47 = scmp.eq.s32.totalorder %s27, 0
      %p48 = por %p46, %p47
      %p49 = scmp.ne.s32.totalorder %s35, %s36
      %p50 = scmp.eq.s32.totalorder %s28, 1
      %p51 = por %p49, %p50
      %p53 = scmp.ne.s32.totalorder %s36, %s52
      %p54 = scmp.eq.s32.totalorder %s28, 0
      %p55 = por %p53, %p54
      %s57 = sadd.s32 %s56, 1
      %p60 = scmp.eq.s32.totalorder %s22, 1
      %p61 = scmp.ne.s32.totalorder %s56, %s58
      %p62 = scmp.eq.s32.totalorder %s22, 0
      %p63 = por %p61, %p62
      %p64 = scmp.ne.s32.totalorder %s56, %s58
      %p65 = scmp.eq.s32.totalorder %s27, 1
      %p66 = por %p64, %p65
      %p67 = scmp.ne.s32.totalorder %s58, %s59
      %p68 = scmp.eq.s32.totalorder %s27, 0
      %p69 = por %p67, %p68
      %p70 = scmp.ne.s32.totalorder %s58, %s59
      %p71 = scmp.eq.s32.totalorder %s28, 1
      %p72 = por %p70, %p71
      %p74 = scmp.ne.s32.totalorder %s59, %s73
      %p75 = scmp.eq.s32.totalorder %s28, 0
      %p76 = por %p74, %p75
      %s78 = sadd.s32 %s77, 1
      %p81 = scmp.eq.s32.totalorder %s22, 1
      %p82 = scmp.ne.s32.totalorder %s77, %s79
      %p83 = scmp.eq.s32.totalorder %s22, 0
      %p84 = por %p82, %p83
      %p85 = scmp.ne.s32.totalorder %s77, %s79
      %p86 = scmp.eq.s32.totalorder %s27, 1
      %p87 = por %p85, %p86
      %p88 = scmp.ne.s32.totalorder %s79, %s80
      %p89 = scmp.eq.s32.totalorder %s27, 0
      %p90 = por %p88, %p89
      %p91 = scmp.ne.s32.totalorder %s79, %s80
      %p92 = scmp.eq.s32.totalorder %s28, 1
      %p93 = por %p91, %p92
      %p95 = scmp.ne.s32.totalorder %s80, %s94
      %p96 = scmp.eq.s32.totalorder %s28, 0
      %p97 = por %p95, %p96
      %s99 = sadd.s32 %s98, 1
      %p102 = scmp.eq.s32.totalorder %s22, 1
      %p103 = scmp.ne.s32.totalorder %s98, %s100
      %p104 = scmp.eq.s32.totalorder %s22, 0
      %p105 = por %p103, %p104
      %p106 = scmp.ne.s32.totalorder %s98, %s100
      %p107 = scmp.eq.s32.totalorder %s27, 1
      %p108 = por %p106, %p107
      %p109 = scmp.ne.s32.totalorder %s100, %s101
      %p110 = scmp.eq.s32.totalorder %s27, 0
      %p111 = por %p109, %p110
      %p112 = scmp.ne.s32.totalorder %s100, %s101
      %p113 = scmp.eq.s32.totalorder %s28, 1
      %p114 = por %p112, %p113
      %p116 = scmp.ne.s32.totalorder %s101, %s115
      %p117 = scmp.eq.s32.totalorder %s28, 0
      %p118 = por %p116, %p117
      %s120 = sadd.s32 %s119, 1
      %p123 = scmp.eq.s32.totalorder %s22, 1
      %p124 = scmp.ne.s32.totalorder %s119, %s121
      %p125 = scmp.eq.s32.totalorder %s22, 0
      %p126 = por %p124, %p125
      %p127 = scmp.ne.s32.totalorder %s119, %s121
      %p128 = scmp.eq.s32.totalorder %s27, 1
      %p129 = por %p127, %p128
      %p130 = scmp.ne.s32.totalorder %s121, %s122
      %p131 = scmp.eq.s32.totalorder %s27, 0
      %p132 = por %p130, %p131
      %p133 = scmp.ne.s32.totalorder %s121, %s122
      %p134 = scmp.eq.s32.totalorder %s28, 1
      %p135 = por %p133, %p134
      %p137 = scmp.ne.s32.totalorder %s122, %s136
      %p138 = scmp.eq.s32.totalorder %s28, 0
      %p139 = por %p137, %p138
      %s141 = sadd.s32 %s140, 1
      %p144 = scmp.eq.s32.totalorder %s22, 1
      %p145 = scmp.ne.s32.totalorder %s140, %s142
      %p146 = scmp.eq.s32.totalorder %s22, 0
      %p147 = por %p145, %p146
      %p148 = scmp.ne.s32.totalorder %s140, %s142
      %p149 = scmp.eq.s32.totalorder %s27, 1
      %p150 = por %p148, %p149
      %p151 = scmp.ne.s32.totalorder %s142, %s143
      %p152 = scmp.eq.s32.totalorder %s27, 0
      %p153 = por %p151, %p152
      %p154 = scmp.ne.s32.totalorder %s142, %s143
      %p155 = scmp.eq.s32.totalorder %s28, 1
      %p156 = por %p154, %p155
      %p158 = scmp.ne.s32.totalorder %s143, %s157
      %p159 = scmp.eq.s32.totalorder %s28, 0
      %p160 = por %p158, %p159
      %s162 = sadd.s32 %s161, 1
      %p165 = scmp.eq.s32.totalorder %s22, 1
      %p166 = scmp.ne.s32.totalorder %s161, %s163
      %p167 = scmp.eq.s32.totalorder %s22, 0
      %p168 = por %p166, %p167
      %p169 = scmp.ne.s32.totalorder %s161, %s163
      %p170 = scmp.eq.s32.totalorder %s27, 1
      %p171 = por %p169, %p170
      %p172 = scmp.ne.s32.totalorder %s163, %s164
      %p173 = scmp.eq.s32.totalorder %s27, 0
      %p174 = por %p172, %p173
      %p175 = scmp.ne.s32.totalorder %s163, %s164
      %p176 = scmp.eq.s32.totalorder %s28, 1
      %p177 = por %p175, %p176
      %p179 = scmp.ne.s32.totalorder %s164, %s178
      %p180 = scmp.eq.s32.totalorder %s28, 0
      %p181 = por %p179, %p180
      %s183 = sadd.s32 %s182, 1
      %p186 = scmp.eq.s32.totalorder %s22, 1
      %p187 = scmp.ne.s32.totalorder %s182, %s184
      %p188 = scmp.eq.s32.totalorder %s22, 0
      %p189 = por %p187, %p188
      %p190 = scmp.ne.s32.totalorder %s182, %s184
      %p191 = scmp.eq.s32.totalorder %s27, 1
      %p192 = por %p190, %p191
      %p193 = scmp.ne.s32.totalorder %s184, %s185
      %p194 = scmp.eq.s32.totalorder %s27, 0
      %p195 = por %p193, %p194
      %p196 = scmp.ne.s32.totalorder %s184, %s185
      %p197 = scmp.eq.s32.totalorder %s28, 1
      %p198 = por %p196, %p197
      %p200 = scmp.ne.s32.totalorder %s185, %s199
      %p201 = scmp.eq.s32.totalorder %s28, 0
      %p202 = por %p200, %p201
      %s204 = sadd.s32 %s203, 1
      %p207 = scmp.eq.s32.totalorder %s22, 1
      %p208 = scmp.ne.s32.totalorder %s203, %s205
      %p209 = scmp.eq.s32.totalorder %s22, 0
      %p210 = por %p208, %p209
      %p211 = scmp.ne.s32.totalorder %s203, %s205
      %p212 = scmp.eq.s32.totalorder %s27, 1
      %p213 = por %p211, %p212
      %p214 = scmp.ne.s32.totalorder %s205, %s206
      %p215 = scmp.eq.s32.totalorder %s27, 0
      %p216 = por %p214, %p215
      %p217 = scmp.ne.s32.totalorder %s205, %s206
      %p218 = scmp.eq.s32.totalorder %s28, 1
      %p219 = por %p217, %p218
      %p221 = scmp.ne.s32.totalorder %s206, %s220
      %p222 = scmp.eq.s32.totalorder %s28, 0
      %p223 = por %p221, %p222
      %s225 = sadd.s32 %s224, 1
      %p228 = scmp.eq.s32.totalorder %s22, 1
      %p229 = scmp.ne.s32.totalorder %s224, %s226
      %p230 = scmp.eq.s32.totalorder %s22, 0
      %p231 = por %p229, %p230
      %p232 = scmp.ne.s32.totalorder %s224, %s226
      %p233 = scmp.eq.s32.totalorder %s27, 1
      %p234 = por %p232, %p233
      %p235 = scmp.ne.s32.totalorder %s226, %s227
      %p236 = scmp.eq.s32.totalorder %s27, 0
      %p237 = por %p235, %p236
      %p238 = scmp.ne.s32.totalorder %s226, %s227
      %p239 = scmp.eq.s32.totalorder %s28, 1
      %p240 = por %p238, %p239
      %p242 = scmp.ne.s32.totalorder %s227, %s241
      %p243 = scmp.eq.s32.totalorder %s28, 0
      %p244 = por %p242, %p243
      %s246 = sadd.s32 %s245, 1
      %p249 = scmp.eq.s32.totalorder %s22, 1
      %p250 = scmp.ne.s32.totalorder %s245, %s247
      %p251 = scmp.eq.s32.totalorder %s22, 0
      %p252 = por %p250, %p251
      %p253 = scmp.ne.s32.totalorder %s245, %s247
      %p254 = scmp.eq.s32.totalorder %s27, 1
      %p255 = por %p253, %p254
      %p256 = scmp.ne.s32.totalorder %s247, %s248
      %p257 = scmp.eq.s32.totalorder %s27, 0
      %p258 = por %p256, %p257
      %p259 = scmp.ne.s32.totalorder %s247, %s248
      %p260 = scmp.eq.s32.totalorder %s28, 1
      %p261 = por %p259, %p260
      %p263 = scmp.ne.s32.totalorder %s248, %s262
      %p264 = scmp.eq.s32.totalorder %s28, 0
      %p265 = por %p263, %p264
      %s266 = ssub.s32 %s22, %s29
      %p267 = scmp.eq.s32.totalorder %s266, 0
      %s269 = sadd.s32 %s268, 1
      %s270 = scalar_select %p267, %s268, %s269
      %p273 = pneg %p267
      %p274 = scmp.eq.s32.totalorder %s22, 1
      %p275 = por %p273, %p274
      %p276 = scmp.ne.s32.totalorder %s268, %s271
      %p277 = scmp.eq.s32.totalorder %s22, 0
      %p278 = por %p276, %p277
      %p279 = scmp.ne.s32.totalorder %s268, %s271
      %p280 = scmp.eq.s32.totalorder %s27, 1
      %p281 = por %p279, %p280
      %p282 = scmp.ne.s32.totalorder %s271, %s272
      %p283 = scmp.eq.s32.totalorder %s27, 0
      %p284 = por %p282, %p283
      %p285 = scmp.ne.s32.totalorder %s271, %s272
      %p286 = scmp.eq.s32.totalorder %s28, 1
      %p287 = por %p285, %p286
      %p289 = scmp.ne.s32.totalorder %s272, %s288
      %p290 = scmp.eq.s32.totalorder %s28, 0
      %p291 = por %p289, %p290
      %p292 = scmp.le.s32.totalorder 1, %s22
      %p293 = scmp.lt.s32.totalorder %s22, 3
      %p294 = pnand %p292, %p293
      %p295 = pneg %p294
      // Predicated region
      $region9: #{tpu_custom_call.1} parent=5 // pred_check
        _
      $region10: #{tpu_custom_call.1} parent=5 // pred_check_branch
        %297 = sbr.rel (%p294) target = $region12
      $region11: #{tpu_custom_call.1} parent=5 // pred_region
        %s298 = ssub.s32 %s22, 1
        // Predicated region
        $region13: #{tpu_custom_call.1} parent=11 // pred_check
          %p299 = pneg %p69
        $region14: #{tpu_custom_call.1} parent=11 // pred_check_branch
          %301 = sbr.rel (%p299) target = $region16
        $region15: #{tpu_custom_call.1} parent=11 // pred_region
          _
        $region16: #{tpu_custom_call.1} parent=11 // pred_fallthru
          _
        // Predicated region
        $region17: #{tpu_custom_call.1} parent=11 // pred_check
          %p302 = pneg %p90
        $region18: #{tpu_custom_call.1} parent=11 // pred_check_branch
          %304 = sbr.rel (%p302) target = $region20
        $region19: #{tpu_custom_call.1} parent=11 // pred_region
          _
        $region20: #{tpu_custom_call.1} parent=11 // pred_fallthru
          _
        // Predicated region
        $region21: #{tpu_custom_call.1} parent=11 // pred_check
          %p305 = pneg %p111
        $region22: #{tpu_custom_call.1} parent=11 // pred_check_branch
          %307 = sbr.rel (%p305) target = $region24
        $region23: #{tpu_custom_call.1} parent=11 // pred_region
          _
        $region24: #{tpu_custom_call.1} parent=11 // pred_fallthru
          _
        // Predicated region
        $region25: #{tpu_custom_call.1} parent=11 // pred_check
          %p308 = pneg %p132
        $region26: #{tpu_custom_call.1} parent=11 // pred_check_branch
          %310 = sbr.rel (%p308) target = $region28
        $region27: #{tpu_custom_call.1} parent=11 // pred_region
          _
        $region28: #{tpu_custom_call.1} parent=11 // pred_fallthru
          _
        // Predicated region
        $region29: #{tpu_custom_call.1} parent=11 // pred_check
          %p311 = pneg %p153
        $region30: #{tpu_custom_call.1} parent=11 // pred_check_branch
          %313 = sbr.rel (%p311) target = $region32
        $region31: #{tpu_custom_call.1} parent=11 // pred_region
          %s315 = ssub.s32 4096, 4096
          %316 = vsyncadd [#allocation3], %s315
          %s317 = sshll.u32 [#allocation2], 4
          %s318 = int_to_ptr.vmem [resolvable:$true] %s317
          %323 = dma.hbm_to_vmem [thread:$0]  %s5, 4096, %s318, [#allocation3], 128, 128, 8
        $region32: #{tpu_custom_call.1} parent=11 // pred_fallthru
          _
        // Predicated region
        $region33: #{tpu_custom_call.1} parent=11 // pred_check
          %p324 = pneg %p174
        $region34: #{tpu_custom_call.1} parent=11 // pred_check_branch
          %326 = sbr.rel (%p324) target = $region36
        $region35: #{tpu_custom_call.1} parent=11 // pred_region
          _
        $region36: #{tpu_custom_call.1} parent=11 // pred_fallthru
          _
        // Predicated region
        $region37: #{tpu_custom_call.1} parent=11 // pred_check
          %p327 = pneg %p195
        $region38: #{tpu_custom_call.1} parent=11 // pred_check_branch
          %329 = sbr.rel (%p327) target = $region40
        $region39: #{tpu_custom_call.1} parent=11 // pred_region
          %s331 = ssub.s32 4096, 4096
          %332 = vsyncadd [#allocation6], %s331
          %s333 = sshll.u32 [#allocation5], 4
          %s334 = int_to_ptr.vmem [resolvable:$true] %s333
          %339 = dma.hbm_to_vmem [thread:$0]  %s7, 4096, %s334, [#allocation6], 128, 128, 8
        $region40: #{tpu_custom_call.1} parent=11 // pred_fallthru
          _
        // Predicated region
        $region41: #{tpu_custom_call.1} parent=11 // pred_check
          %p340 = pneg %p216
        $region42: #{tpu_custom_call.1} parent=11 // pred_check_branch
          %342 = sbr.rel (%p340) target = $region44
        $region43: #{tpu_custom_call.1} parent=11 // pred_region
          _
        $region44: #{tpu_custom_call.1} parent=11 // pred_fallthru
          _
        // Predicated region
        $region45: #{tpu_custom_call.1} parent=11 // pred_check
          %p343 = pneg %p237
        $region46: #{tpu_custom_call.1} parent=11 // pred_check_branch
          %345 = sbr.rel (%p343) target = $region48
        $region47: #{tpu_custom_call.1} parent=11 // pred_region
          %s347 = ssub.s32 2048, 2048
          %348 = vsyncadd [#allocation6], %s347
          %s349 = sshll.u32 [#allocation7], 4
          %s350 = int_to_ptr.vmem [resolvable:$true] %s349
          %355 = dma.hbm_to_vmem [thread:$0]  %s9, 2048, %s350, [#allocation6], 64, 64, 4
        $region48: #{tpu_custom_call.1} parent=11 // pred_fallthru
          _
        // Predicated region
        $region49: #{tpu_custom_call.1} parent=11 // pred_check
          %p356 = pneg %p258
        $region50: #{tpu_custom_call.1} parent=11 // pred_check_branch
          %358 = sbr.rel (%p356) target = $region52
        $region51: #{tpu_custom_call.1} parent=11 // pred_region
          _
        $region52: #{tpu_custom_call.1} parent=11 // pred_fallthru
          _
      $region12: #{tpu_custom_call.1} parent=5 // pred_fallthru
        _
      %p359 = scmp.lt.s32.totalorder %s22, 2
      // Predicated region
      $region53: #{tpu_custom_call.1} parent=5 // pred_check
        %p360 = pneg %p359
      $region54: #{tpu_custom_call.1} parent=5 // pred_check_branch
        %362 = sbr.rel (%p360) target = $region56
      $region55: #{tpu_custom_call.1} parent=5 // pred_region
        // Predicated region
        $region57: #{tpu_custom_call.1} parent=55 // pred_check
          %p363 = pneg %p42
        $region58: #{tpu_custom_call.1} parent=55 // pred_check_branch
          %365 = sbr.rel (%p363) target = $region60
        $region59: #{tpu_custom_call.1} parent=55 // pred_region
          %s366 = smul.u32 16, %s22
          %p367 = scmp.lt.s32.totalorder %s366, 31
          %s368 = scalar_select %p367, %s366, 31
          %s369 = smul.addr %s368, 8
          %s370 = scalar_lea.vmem %s0, %s369
          %s371 = smul.u32 16, %s22
        $region60: #{tpu_custom_call.1} parent=55 // pred_fallthru
          _
      $region56: #{tpu_custom_call.1} parent=5 // pred_fallthru
        _
      %p372 = scmp.le.s32.totalorder 1, %s22
      %p373 = scmp.lt.s32.totalorder %s22, 3
      %p374 = pnand %p372, %p373
      %p375 = pneg %p374
      // Predicated region
      $region61: #{tpu_custom_call.1} parent=5 // pred_check
        _
      $region62: #{tpu_custom_call.1} parent=5 // pred_check_branch
        %377 = sbr.rel (%p374) target = $region64
      $region63: #{tpu_custom_call.1} parent=5 // pred_region
        %s378 = ssub.s32 %s22, 1
        // Predicated region
        $region65: #{tpu_custom_call.1} parent=63 // pred_check
          %p379 = pneg %p153
        $region66: #{tpu_custom_call.1} parent=63 // pred_check_branch
          %381 = sbr.rel (%p379) target = $region68
        $region67: #{tpu_custom_call.1} parent=63 // pred_region
          %382 = dma.done [#allocation3], 4096
        $region68: #{tpu_custom_call.1} parent=63 // pred_fallthru
          _
        // Predicated region
        $region69: #{tpu_custom_call.1} parent=63 // pred_check
          %p383 = pneg %p195
        $region70: #{tpu_custom_call.1} parent=63 // pred_check_branch
          %385 = sbr.rel (%p383) target = $region72
        $region71: #{tpu_custom_call.1} parent=63 // pred_region
          %386 = dma.done [#allocation6], 4096
        $region72: #{tpu_custom_call.1} parent=63 // pred_fallthru
          _
        // Predicated region
        $region73: #{tpu_custom_call.1} parent=63 // pred_check
          %p387 = pneg %p237
        $region74: #{tpu_custom_call.1} parent=63 // pred_check_branch
          %389 = sbr.rel (%p387) target = $region76
        $region75: #{tpu_custom_call.1} parent=63 // pred_region
          %390 = dma.done [#allocation6], 2048
        $region76: #{tpu_custom_call.1} parent=63 // pred_fallthru
          _
        %s391 = smul.u32 16, %s27
        %p392 = scmp.lt.s32.totalorder %s391, 31
        %s393 = scalar_select %p392, %s391, 31
        %s394 = smul.addr %s393, 8
        %s395 = scalar_lea.vmem %s0, %s394
        %p396 = pneg %p48
        %p397 = pneg %p45
        %p398 = pneg %p69
        %p399 = pneg %p66
        %p400 = pneg %p90
        %p401 = pneg %p87
        %p402 = pneg %p111
        %p403 = pneg %p108
        %p404 = pneg %p132
        %p405 = pneg %p129
        %p406 = pneg %p153
        %p407 = pneg %p150
        %p408 = pneg %p174
        %p409 = pneg %p171
        %p410 = pneg %p195
        %p411 = pneg %p192
        %p412 = pneg %p216
        %p413 = pneg %p213
        %p414 = pneg %p237
        %p415 = pneg %p234
        %p416 = pneg %p258
        %p417 = pneg %p255
        %p418 = pneg %p284
        %p419 = pneg %p281
        %s420 = sand.u32 %s271, 1
        %s421 = scalar_lea.sflag [#allocation4], %s420
        %s422 = sand.u32 %s271, 1
        %s423 = smul.addr %s422, 128
        %s424 = scalar_lea.vmem [#allocation8], %s423
        %s425 = smul.u32 16, %s27
        %p426 = scmp.lt.s32.totalorder %s425, 31
        %s427 = scalar_select %p426, %s425, 31
        %s428 = smul.addr %s427, 8
        %s429 = scalar_lea.vmem %s0, %s428
        %s430 = smul.u32 16, %s27
        %s431 = smul.u32 16, %s27
        %v433 = vld [vmem:[%s429] sm:$0xff]
        %v434 = vld [vmem:[%s429 + $0x8] sm:$0xff]
        %v435 = vld [vmem:[%s429 + $0x10] sm:$0xff]
        %v436 = vld [vmem:[%s429 + $0x18] sm:$0xff]
        %v437 = vld [vmem:[%s429 + $0x20] sm:$0xff]
        %v438 = vld [vmem:[%s429 + $0x28] sm:$0xff]
        %v439 = vld [vmem:[%s429 + $0x30] sm:$0xff]
        %v440 = vld [vmem:[%s429 + $0x38] sm:$0xff]
        %v441 = vld [vmem:[%s429 + $0x40] sm:$0xff]
        %v442 = vld [vmem:[%s429 + $0x48] sm:$0xff]
        %v443 = vld [vmem:[%s429 + $0x50] sm:$0xff]
        %v444 = vld [vmem:[%s429 + $0x58] sm:$0xff]
        %v445 = vld [vmem:[%s429 + $0x60] sm:$0xff]
        %v446 = vld [vmem:[%s429 + $0x68] sm:$0xff]
        %v447 = vld [vmem:[%s429 + $0x70] sm:$0xff]
        %v448 = vld [vmem:[%s429 + $0x78] sm:$0xff]
        %v449 = vpack.c.bf16 %v434, %v433
        %v450 = vpack.c.bf16 %v436, %v435
        %v451 = vpack.c.bf16 %v438, %v437
        %v452 = vpack.c.bf16 %v440, %v439
        %v453 = vpack.c.bf16 %v442, %v441
        %v454 = vpack.c.bf16 %v444, %v443
        %v455 = vpack.c.bf16 %v446, %v445
        %v456 = vpack.c.bf16 %v448, %v447
        %v457 = vld [vmem:[%s1] sm:$0xff]
        %v458 = vld [vmem:[%s1 + $0x8] sm:$0xff]
        %v459 = vld [vmem:[%s1 + $0x10] sm:$0xff]
        %v460 = vld [vmem:[%s2] sm:$0x3]
        %v462 = vlaneseq
        %v463 = vshrl.u32 %v462, 7
        %v464 = vsub.s32 0, %v463
        %v465 = vrot.slane %v460, %v464
        %v466 = vlaneseq
        %v467 = vshrl.u32 %v466, 7
        %v468 = vsub.s32 1, %v467
        %v469 = vrot.slane %v460, %v468
        %v475 = vunpack.c.l.b16 %v457
        %v476 = vunpack.c.h.b16 %v457
        %v477 = vunpack.c.l.b16 %v458
        %v478 = vunpack.c.h.b16 %v458
        %v479 = vunpack.c.l.b16 %v459
        %v480 = vunpack.c.h.b16 %v459
        %v481 = vpack.c.b16 %v477, %v475
        %v482 = vpack.c.b16 %v478, %v476
        %v483 = vpack.c.b16 %v479, %v479
        %v484 = vpack.c.b16 %v480, %v480
        %vm487 = vcmask 195584
        %v489 = vsel %vm487, %v449, 0
        %v492 = vsel %vm487, %v450, 0
        %v495 = vsel %vm487, %v451, 0
        %v498 = vsel %vm487, %v452, 0
        %v501 = vsel %vm487, %v453, 0
        %v504 = vsel %vm487, %v454, 0
        %v507 = vsel %vm487, %v455, 0
        %v510 = vsel %vm487, %v456, 0
        %vm512 = vcmask 1043456
        %v514 = vsel %vm512, %v483, 0
        %v517 = vsel %vm512, %v484, 0
        %519 = vmatprep.subr.bf16.mxu0 %v482
        %520 = vmatpush1.bf16.msra.mxu0 %v481
        %521 = vmatprep.subr.bf16.mxu0 %v517
        %522 = vmatpush1.bf16.msra.mxu0 %v514
        %523 = vmatprep.subr.bf16.mxu0 0
        %524 = vmatpush1.bf16.msra.mxu0 0
        %525 = vmatprep.subr.bf16.mxu0 0
        %526 = vmatpush1.bf16.msra.mxu0 0
        %527 = vmatprep.subr.bf16.mxu0 0
        %528 = vmatpush1.bf16.msra.mxu0 0
        %529 = vmatprep.subr.bf16.mxu0 0
        %530 = vmatpush1.bf16.msra.mxu0 0
        %531 = vmatprep.subr.bf16.mxu0 0
        %532 = vmatpush1.bf16.msra.mxu0 0
        %533 = vmatprep.subr.bf16.mxu0 0
        %534 = vmatpush1.bf16.msra.mxu0 0
        %535 = vmatprep.subr.bf16.mxu0 0
        %536 = vmatpush1.bf16.msra.mxu0 0
        %537 = vmatprep.subr.bf16.mxu0 0
        %538 = vmatpush1.bf16.msra.mxu0 0
        %539 = vmatprep.subr.bf16.mxu0 0
        %540 = vmatpush1.bf16.msra.mxu0 0
        %541 = vmatprep.subr.bf16.mxu0 0
        %542 = vmatpush1.bf16.msra.mxu0 0
        %543 = vmatprep.subr.bf16.mxu0 0
        %544 = vmatpush1.bf16.msra.mxu0 0
        %545 = vmatprep.subr.bf16.mxu0 0
        %546 = vmatpush1.bf16.msra.mxu0 0
        %547 = vmatprep.subr.bf16.mxu0 0
        %548 = vmatpush1.bf16.msra.mxu0 0
        %549 = vmatprep.subr.bf16.mxu0 0
        %550 = vmatpush1.bf16.msra.mxu0 0
        %551 = vmatprep.mubr.bf16.mxu0 0
        %552 = vmatmul.mubr.bf16.gmra.mrb[0].mxu0 %v489
        %v553 = vpop.f32.mrb[0].mxu0
        %v554 = vadd.f32 %v465, %v553
        %v555 = vpop.f32.mrb[0].mxu0
        %v556 = vadd.f32 %v469, %v555
        %v557 = vpop.f32.mrb[0].mxu0
        %v558 = vadd.f32 %v465, %v557
        %v559 = vpop.f32.mrb[0].mxu0
        %v560 = vadd.f32 %v469, %v559
        %561 = vmatprep.mubr.bf16.mxu0 0
        %562 = vmatmul.mubr.bf16.gmra.mrb[0].mxu0 %v492
        %v563 = vpop.f32.mrb[0].mxu0
        %v564 = vadd.f32 %v465, %v563
        %v565 = vpop.f32.mrb[0].mxu0
        %v566 = vadd.f32 %v469, %v565
        %v567 = vpop.f32.mrb[0].mxu0
        %v568 = vadd.f32 %v465, %v567
        %v569 = vpop.f32.mrb[0].mxu0
        %v570 = vadd.f32 %v469, %v569
        %571 = vmatprep.mubr.bf16.mxu0 0
        %572 = vmatmul.mubr.bf16.gmra.mrb[0].mxu0 %v495
        %v573 = vpop.f32.mrb[0].mxu0
        %v574 = vadd.f32 %v465, %v573
        %v575 = vpop.f32.mrb[0].mxu0
        %v576 = vadd.f32 %v469, %v575
        %v577 = vpop.f32.mrb[0].mxu0
        %v578 = vadd.f32 %v465, %v577
        %v579 = vpop.f32.mrb[0].mxu0
        %v580 = vadd.f32 %v469, %v579
        %581 = vmatprep.mubr.bf16.mxu0 0
        %582 = vmatmul.mubr.bf16.gmra.mrb[0].mxu0 %v498
        %v583 = vpop.f32.mrb[0].mxu0
        %v584 = vadd.f32 %v465, %v583
        %v585 = vpop.f32.mrb[0].mxu0
        %v586 = vadd.f32 %v469, %v585
        %v587 = vpop.f32.mrb[0].mxu0
        %v588 = vadd.f32 %v465, %v587
        %v589 = vpop.f32.mrb[0].mxu0
        %v590 = vadd.f32 %v469, %v589
        %591 = vmatprep.mubr.bf16.mxu0 0
        %592 = vmatmul.mubr.bf16.gmra.mrb[0].mxu0 %v501
        %v593 = vpop.f32.mrb[0].mxu0
        %v594 = vadd.f32 %v465, %v593
        %v595 = vpop.f32.mrb[0].mxu0
        %v596 = vadd.f32 %v469, %v595
        %v597 = vpop.f32.mrb[0].mxu0
        %v598 = vadd.f32 %v465, %v597
        %v599 = vpop.f32.mrb[0].mxu0
        %v600 = vadd.f32 %v469, %v599
        %601 = vmatprep.mubr.bf16.mxu0 0
        %602 = vmatmul.mubr.bf16.gmra.mrb[0].mxu0 %v504
        %v603 = vpop.f32.mrb[0].mxu0
        %v604 = vadd.f32 %v465, %v603
        %v605 = vpop.f32.mrb[0].mxu0
        %v606 = vadd.f32 %v469, %v605
        %v607 = vpop.f32.mrb[0].mxu0
        %v608 = vadd.f32 %v465, %v607
        %v609 = vpop.f32.mrb[0].mxu0
        %v610 = vadd.f32 %v469, %v609
        %611 = vmatprep.mubr.bf16.mxu0 0
        %612 = vmatmul.mubr.bf16.gmra.mrb[0].mxu0 %v507
        %v613 = vpop.f32.mrb[0].mxu0
        %v614 = vadd.f32 %v465, %v613
        %v615 = vpop.f32.mrb[0].mxu0
        %v616 = vadd.f32 %v469, %v615
        %v617 = vpop.f32.mrb[0].mxu0
        %v618 = vadd.f32 %v465, %v617
        %v619 = vpop.f32.mrb[0].mxu0
        %v620 = vadd.f32 %v469, %v619
        %621 = vmatprep.mubr.bf16.mxu0 0
        %622 = vmatmul.mubr.bf16.gmra.mrb[0].mxu0 %v510
        %v623 = vpop.f32.mrb[0].mxu0
        %v624 = vadd.f32 %v465, %v623
        %v625 = vpop.f32.mrb[0].mxu0
        %v626 = vadd.f32 %v469, %v625
        %v627 = vpop.f32.mrb[0].mxu0
        %v628 = vadd.f32 %v465, %v627
        %v629 = vpop.f32.mrb[0].mxu0
        %v630 = vadd.f32 %v469, %v629
        %631 = vdwg.mxu0
        %vm632 = vcmp.ge.f32.partialorder %v554, 0.0
        %vm633 = vcmp.ge.f32.partialorder %v556, 0.0
        %vm634 = vcmp.ge.f32.partialorder %v558, 0.0
        %vm635 = vcmp.ge.f32.partialorder %v560, 0.0
        %vm636 = vcmp.ge.f32.partialorder %v564, 0.0
        %vm637 = vcmp.ge.f32.partialorder %v566, 0.0
        %vm638 = vcmp.ge.f32.partialorder %v568, 0.0
        %vm639 = vcmp.ge.f32.partialorder %v570, 0.0
        %vm640 = vcmp.ge.f32.partialorder %v574, 0.0
        %vm641 = vcmp.ge.f32.partialorder %v576, 0.0
        %vm642 = vcmp.ge.f32.partialorder %v578, 0.0
        %vm643 = vcmp.ge.f32.partialorder %v580, 0.0
        %vm644 = vcmp.ge.f32.partialorder %v584, 0.0
        %vm645 = vcmp.ge.f32.partialorder %v586, 0.0
        %vm646 = vcmp.ge.f32.partialorder %v588, 0.0
        %vm647 = vcmp.ge.f32.partialorder %v590, 0.0
        %vm648 = vcmp.ge.f32.partialorder %v594, 0.0
        %vm649 = vcmp.ge.f32.partialorder %v596, 0.0
        %vm650 = vcmp.ge.f32.partialorder %v598, 0.0
        %vm651 = vcmp.ge.f32.partialorder %v600, 0.0
        %vm652 = vcmp.ge.f32.partialorder %v604, 0.0
        %vm653 = vcmp.ge.f32.partialorder %v606, 0.0
        %vm654 = vcmp.ge.f32.partialorder %v608, 0.0
        %vm655 = vcmp.ge.f32.partialorder %v610, 0.0
        %vm656 = vcmp.ge.f32.partialorder %v614, 0.0
        %vm657 = vcmp.ge.f32.partialorder %v616, 0.0
        %vm658 = vcmp.ge.f32.partialorder %v618, 0.0
        %vm659 = vcmp.ge.f32.partialorder %v620, 0.0
        %vm660 = vcmp.ge.f32.partialorder %v624, 0.0
        %vm661 = vcmp.ge.f32.partialorder %v626, 0.0
        %vm662 = vcmp.ge.f32.partialorder %v628, 0.0
        %vm663 = vcmp.ge.f32.partialorder %v630, 0.0
        %v664 = vmul.f32 %v554, 0.01
        %v665 = vmul.f32 %v556, 0.01
        %v666 = vmul.f32 %v558, 0.01
        %v667 = vmul.f32 %v560, 0.01
        %v668 = vmul.f32 %v564, 0.01
        %v669 = vmul.f32 %v566, 0.01
        %v670 = vmul.f32 %v568, 0.01
        %v671 = vmul.f32 %v570, 0.01
        %v672 = vmul.f32 %v574, 0.01
        %v673 = vmul.f32 %v576, 0.01
        %v674 = vmul.f32 %v578, 0.01
        %v675 = vmul.f32 %v580, 0.01
        %v676 = vmul.f32 %v584, 0.01
        %v677 = vmul.f32 %v586, 0.01
        %v678 = vmul.f32 %v588, 0.01
        %v679 = vmul.f32 %v590, 0.01
        %v680 = vmul.f32 %v594, 0.01
        %v681 = vmul.f32 %v596, 0.01
        %v682 = vmul.f32 %v598, 0.01
        %v683 = vmul.f32 %v600, 0.01
        %v684 = vmul.f32 %v604, 0.01
        %v685 = vmul.f32 %v606, 0.01
        %v686 = vmul.f32 %v608, 0.01
        %v687 = vmul.f32 %v610, 0.01
        %v688 = vmul.f32 %v614, 0.01
        %v689 = vmul.f32 %v616, 0.01
        %v690 = vmul.f32 %v618, 0.01
        %v691 = vmul.f32 %v620, 0.01
        %v692 = vmul.f32 %v624, 0.01
        %v693 = vmul.f32 %v626, 0.01
        %v694 = vmul.f32 %v628, 0.01
        %v695 = vmul.f32 %v630, 0.01
        %v696 = vsel %vm632, %v554, %v664
        %v697 = vsel %vm633, %v556, %v665
        %v698 = vsel %vm634, %v558, %v666
        %v699 = vsel %vm635, %v560, %v667
        %v700 = vsel %vm636, %v564, %v668
        %v701 = vsel %vm637, %v566, %v669
        %v702 = vsel %vm638, %v568, %v670
        %v703 = vsel %vm639, %v570, %v671
        %v704 = vsel %vm640, %v574, %v672
        %v705 = vsel %vm641, %v576, %v673
        %v706 = vsel %vm642, %v578, %v674
        %v707 = vsel %vm643, %v580, %v675
        %v708 = vsel %vm644, %v584, %v676
        %v709 = vsel %vm645, %v586, %v677
        %v710 = vsel %vm646, %v588, %v678
        %v711 = vsel %vm647, %v590, %v679
        %v712 = vsel %vm648, %v594, %v680
        %v713 = vsel %vm649, %v596, %v681
        %v714 = vsel %vm650, %v598, %v682
        %v715 = vsel %vm651, %v600, %v683
        %v716 = vsel %vm652, %v604, %v684
        %v717 = vsel %vm653, %v606, %v685
        %v718 = vsel %vm654, %v608, %v686
        %v719 = vsel %vm655, %v610, %v687
        %v720 = vsel %vm656, %v614, %v688
        %v721 = vsel %vm657, %v616, %v689
        %v722 = vsel %vm658, %v618, %v690
        %v723 = vsel %vm659, %v620, %v691
        %v724 = vsel %vm660, %v624, %v692
        %v725 = vsel %vm661, %v626, %v693
        %v726 = vsel %vm662, %v628, %v694
        %v727 = vsel %vm663, %v630, %v695
        %v728 = vpack.c.bf16 %v698, %v696
        %v729 = vpack.c.bf16 %v699, %v697
        %v730 = vpack.c.bf16 %v702, %v700
        %v731 = vpack.c.bf16 %v703, %v701
        %v732 = vpack.c.bf16 %v706, %v704
        %v733 = vpack.c.bf16 %v707, %v705
        %v734 = vpack.c.bf16 %v710, %v708
        %v735 = vpack.c.bf16 %v711, %v709
        %v736 = vpack.c.bf16 %v714, %v712
        %v737 = vpack.c.bf16 %v715, %v713
        %v738 = vpack.c.bf16 %v718, %v716
        %v739 = vpack.c.bf16 %v719, %v717
        %v740 = vpack.c.bf16 %v722, %v720
        %v741 = vpack.c.bf16 %v723, %v721
        %v742 = vpack.c.bf16 %v726, %v724
        %v743 = vpack.c.bf16 %v727, %v725
        %v744 = vld [vmem:[%s3] sm:$0xff]
        %v745 = vld [vmem:[%s3 + $0x8] sm:$0xff]
        %v746 = vld [vmem:[%s3 + $0x10] sm:$0xff]
        %v747 = vld [vmem:[%s3 + $0x18] sm:$0xff]
        %v748 = vld [vmem:[%s3 + $0x20] sm:$0xff]
        %v749 = vld [vmem:[%s3 + $0x28] sm:$0xff]
        %v750 = vld [vmem:[%s3 + $0x30] sm:$0xff]
        %v751 = vld [vmem:[%s3 + $0x38] sm:$0xff]
        %v752 = vld [vmem:[%s3 + $0x40] sm:$0xff]
        %v753 = vld [vmem:[%s3 + $0x48] sm:$0xff]
        %v754 = vld [vmem:[%s3 + $0x50] sm:$0xff]
        %v755 = vld [vmem:[%s3 + $0x58] sm:$0xff]
        %v756 = vld [vmem:[%s3 + $0x60] sm:$0xff]
        %v757 = vld [vmem:[%s3 + $0x68] sm:$0xff]
        %v758 = vld [vmem:[%s3 + $0x70] sm:$0xff]
        %v759 = vld [vmem:[%s3 + $0x78] sm:$0xff]
        %v760 = vld [vmem:[%s3 + $0x80] sm:$0xff]
        %v761 = vld [vmem:[%s3 + $0x88] sm:$0xff]
        %v762 = vld [vmem:[%s3 + $0x90] sm:$0xff]
        %v763 = vld [vmem:[%s3 + $0x98] sm:$0xff]
        %v764 = vld [vmem:[%s3 + $0xa0] sm:$0xff]
        %v765 = vld [vmem:[%s3 + $0xa8] sm:$0xff]
        %v766 = vld [vmem:[%s3 + $0xb0] sm:$0xff]
        %v767 = vld [vmem:[%s3 + $0xb8] sm:$0xff]
        %v768 = vld [vmem:[%s3 + $0xc0] sm:$0xff]
        %v769 = vld [vmem:[%s3 + $0xc8] sm:$0xff]
        %v770 = vld [vmem:[%s3 + $0xd0] sm:$0xff]
        %v771 = vld [vmem:[%s3 + $0xd8] sm:$0xff]
        %v772 = vld [vmem:[%s3 + $0xe0] sm:$0xff]
        %v773 = vld [vmem:[%s3 + $0xe8] sm:$0xff]
        %v774 = vld [vmem:[%s3 + $0xf0] sm:$0xff]
        %v775 = vld [vmem:[%s3 + $0xf8] sm:$0xff]
        %v776 = vld [vmem:[%s4] sm:$0x3]
        %v778 = vlaneseq
        %v779 = vshrl.u32 %v778, 7
        %v780 = vsub.s32 0, %v779
        %v781 = vrot.slane %v776, %v780
        %v782 = vlaneseq
        %v783 = vshrl.u32 %v782, 7
        %v784 = vsub.s32 1, %v783
        %v785 = vrot.slane %v776, %v784
        %v820 = vunpack.c.l.b16 %v744
        %v821 = vunpack.c.h.b16 %v744
        %v822 = vunpack.c.l.b16 %v745
        %v823 = vunpack.c.h.b16 %v745
        %v824 = vunpack.c.l.b16 %v746
        %v825 = vunpack.c.h.b16 %v746
        %v826 = vunpack.c.l.b16 %v747
        %v827 = vunpack.c.h.b16 %v747
        %v828 = vunpack.c.l.b16 %v748
        %v829 = vunpack.c.h.b16 %v748
        %v830 = vunpack.c.l.b16 %v749
        %v831 = vunpack.c.h.b16 %v749
        %v832 = vunpack.c.l.b16 %v750
        %v833 = vunpack.c.h.b16 %v750
        %v834 = vunpack.c.l.b16 %v751
        %v835 = vunpack.c.h.b16 %v751
        %v836 = vunpack.c.l.b16 %v752
        %v837 = vunpack.c.h.b16 %v752
        %v838 = vunpack.c.l.b16 %v753
        %v839 = vunpack.c.h.b16 %v753
        %v840 = vunpack.c.l.b16 %v754
        %v841 = vunpack.c.h.b16 %v754
        %v842 = vunpack.c.l.b16 %v755
        %v843 = vunpack.c.h.b16 %v755
        %v844 = vunpack.c.l.b16 %v756
        %v845 = vunpack.c.h.b16 %v756
        %v846 = vunpack.c.l.b16 %v757
        %v847 = vunpack.c.h.b16 %v757
        %v848 = vunpack.c.l.b16 %v758
        %v849 = vunpack.c.h.b16 %v758
        %v850 = vunpack.c.l.b16 %v759
        %v851 = vunpack.c.h.b16 %v759
        %v852 = vunpack.c.l.b16 %v760
        %v853 = vunpack.c.h.b16 %v760
        %v854 = vunpack.c.l.b16 %v761
        %v855 = vunpack.c.h.b16 %v761
        %v856 = vunpack.c.l.b16 %v762
        %v857 = vunpack.c.h.b16 %v762
        %v858 = vunpack.c.l.b16 %v763
        %v859 = vunpack.c.h.b16 %v763
        %v860 = vunpack.c.l.b16 %v764
        %v861 = vunpack.c.h.b16 %v764
        %v862 = vunpack.c.l.b16 %v765
        %v863 = vunpack.c.h.b16 %v765
        %v864 = vunpack.c.l.b16 %v766
        %v865 = vunpack.c.h.b16 %v766
        %v866 = vunpack.c.l.b16 %v767
        %v867 = vunpack.c.h.b16 %v767
        %v868 = vunpack.c.l.b16 %v768
        %v869 = vunpack.c.h.b16 %v768
        %v870 = vunpack.c.l.b16 %v769
        %v871 = vunpack.c.h.b16 %v769
        %v872 = vunpack.c.l.b16 %v770
        %v873 = vunpack.c.h.b16 %v770
        %v874 = vunpack.c.l.b16 %v771
        %v875 = vunpack.c.h.b16 %v771
        %v876 = vunpack.c.l.b16 %v772
        %v877 = vunpack.c.h.b16 %v772
        %v878 = vunpack.c.l.b16 %v773
        %v879 = vunpack.c.h.b16 %v773
        %v880 = vunpack.c.l.b16 %v774
        %v881 = vunpack.c.h.b16 %v774
        %v882 = vunpack.c.l.b16 %v775
        %v883 = vunpack.c.h.b16 %v775
        %v884 = vpack.c.b16 %v822, %v820
        %v885 = vpack.c.b16 %v823, %v821
        %v886 = vpack.c.b16 %v826, %v824
        %v887 = vpack.c.b16 %v827, %v825
        %v888 = vpack.c.b16 %v830, %v828
        %v889 = vpack.c.b16 %v831, %v829
        %v890 = vpack.c.b16 %v834, %v832
        %v891 = vpack.c.b16 %v835, %v833
        %v892 = vpack.c.b16 %v838, %v836
        %v893 = vpack.c.b16 %v839, %v837
        %v894 = vpack.c.b16 %v842, %v840
        %v895 = vpack.c.b16 %v843, %v841
        %v896 = vpack.c.b16 %v846, %v844
        %v897 = vpack.c.b16 %v847, %v845
        %v898 = vpack.c.b16 %v850, %v848
        %v899 = vpack.c.b16 %v851, %v849
        %v900 = vpack.c.b16 %v854, %v852
        %v901 = vpack.c.b16 %v855, %v853
        %v902 = vpack.c.b16 %v858, %v856
        %v903 = vpack.c.b16 %v859, %v857
        %v904 = vpack.c.b16 %v862, %v860
        %v905 = vpack.c.b16 %v863, %v861
        %v906 = vpack.c.b16 %v866, %v864
        %v907 = vpack.c.b16 %v867, %v865
        %v908 = vpack.c.b16 %v870, %v868
        %v909 = vpack.c.b16 %v871, %v869
        %v910 = vpack.c.b16 %v874, %v872
        %v911 = vpack.c.b16 %v875, %v873
        %v912 = vpack.c.b16 %v878, %v876
        %v913 = vpack.c.b16 %v879, %v877
        %v914 = vpack.c.b16 %v882, %v880
        %v915 = vpack.c.b16 %v883, %v881
        %948 = vmatprep.subr.bf16.mxu0 %v885
        %949 = vmatpush1.bf16.msra.mxu0 %v884
        %950 = vmatprep.subr.bf16.mxu0 %v887
        %951 = vmatpush1.bf16.msra.mxu0 %v886
        %952 = vmatprep.subr.bf16.mxu0 %v889
        %953 = vmatpush1.bf16.msra.mxu0 %v888
        %954 = vmatprep.subr.bf16.mxu0 %v891
        %955 = vmatpush1.bf16.msra.mxu0 %v890
        %956 = vmatprep.subr.bf16.mxu0 %v893
        %957 = vmatpush1.bf16.msra.mxu0 %v892
        %958 = vmatprep.subr.bf16.mxu0 %v895
        %959 = vmatpush1.bf16.msra.mxu0 %v894
        %960 = vmatprep.subr.bf16.mxu0 %v897
        %961 = vmatpush1.bf16.msra.mxu0 %v896
        %962 = vmatprep.subr.bf16.mxu0 %v899
        %963 = vmatpush1.bf16.msra.mxu0 %v898
        %964 = vmatprep.subr.bf16.mxu0 %v901
        %965 = vmatpush1.bf16.msra.mxu0 %v900
        %966 = vmatprep.subr.bf16.mxu0 %v903
        %967 = vmatpush1.bf16.msra.mxu0 %v902
        %968 = vmatprep.subr.bf16.mxu0 %v905
        %969 = vmatpush1.bf16.msra.mxu0 %v904
        %970 = vmatprep.subr.bf16.mxu0 %v907
        %971 = vmatpush1.bf16.msra.mxu0 %v906
        %972 = vmatprep.subr.bf16.mxu0 %v909
        %973 = vmatpush1.bf16.msra.mxu0 %v908
        %974 = vmatprep.subr.bf16.mxu0 %v911
        %975 = vmatpush1.bf16.msra.mxu0 %v910
        %976 = vmatprep.subr.bf16.mxu0 %v913
        %977 = vmatpush1.bf16.msra.mxu0 %v912
        %978 = vmatprep.subr.bf16.mxu0 %v915
        %979 = vmatpush1.bf16.msra.mxu0 %v914
        %980 = vmatprep.mubr.bf16.mxu0 %v729
        %981 = vmatmul.mubr.bf16.gmra.mrb[0].mxu0 %v728
        %v982 = vpop.f32.mrb[0].mxu0
        %v983 = vadd.f32 %v781, %v982
        %v984 = vpop.f32.mrb[0].mxu0
        %v985 = vadd.f32 %v785, %v984
        %v986 = vpop.f32.mrb[0].mxu0
        %v987 = vadd.f32 %v781, %v986
        %v988 = vpop.f32.mrb[0].mxu0
        %v989 = vadd.f32 %v785, %v988
        %990 = vmatprep.mubr.bf16.mxu0 %v731
        %991 = vmatmul.mubr.bf16.gmra.mrb[0].mxu0 %v730
        %v992 = vpop.f32.mrb[0].mxu0
        %v993 = vadd.f32 %v781, %v992
        %v994 = vpop.f32.mrb[0].mxu0
        %v995 = vadd.f32 %v785, %v994
        %v996 = vpop.f32.mrb[0].mxu0
        %v997 = vadd.f32 %v781, %v996
        %v998 = vpop.f32.mrb[0].mxu0
        %v999 = vadd.f32 %v785, %v998
        %1000 = vmatprep.mubr.bf16.mxu0 %v733
        %1001 = vmatmul.mubr.bf16.gmra.mrb[0].mxu0 %v732
        %v1002 = vpop.f32.mrb[0].mxu0
        %v1003 = vadd.f32 %v781, %v1002
        %v1004 = vpop.f32.mrb[0].mxu0
        %v1005 = vadd.f32 %v785, %v1004
        %v1006 = vpop.f32.mrb[0].mxu0
        %v1007 = vadd.f32 %v781, %v1006
        %v1008 = vpop.f32.mrb[0].mxu0
        %v1009 = vadd.f32 %v785, %v1008
        %1010 = vmatprep.mubr.bf16.mxu0 %v735
        %1011 = vmatmul.mubr.bf16.gmra.mrb[0].mxu0 %v734
        %v1012 = vpop.f32.mrb[0].mxu0
        %v1013 = vadd.f32 %v781, %v1012
        %v1014 = vpop.f32.mrb[0].mxu0
        %v1015 = vadd.f32 %v785, %v1014
        %v1016 = vpop.f32.mrb[0].mxu0
        %v1017 = vadd.f32 %v781, %v1016
        %v1018 = vpop.f32.mrb[0].mxu0
        %v1019 = vadd.f32 %v785, %v1018
        %1020 = vmatprep.mubr.bf16.mxu0 %v737
        %1021 = vmatmul.mubr.bf16.gmra.mrb[0].mxu0 %v736
        %v1022 = vpop.f32.mrb[0].mxu0
        %v1023 = vadd.f32 %v781, %v1022
        %v1024 = vpop.f32.mrb[0].mxu0
        %v1025 = vadd.f32 %v785, %v1024
        %v1026 = vpop.f32.mrb[0].mxu0
        %v1027 = vadd.f32 %v781, %v1026
        %v1028 = vpop.f32.mrb[0].mxu0
        %v1029 = vadd.f32 %v785, %v1028
        %1030 = vmatprep.mubr.bf16.mxu0 %v739
        %1031 = vmatmul.mubr.bf16.gmra.mrb[0].mxu0 %v738
        %v1032 = vpop.f32.mrb[0].mxu0
        %v1033 = vadd.f32 %v781, %v1032
        %v1034 = vpop.f32.mrb[0].mxu0
        %v1035 = vadd.f32 %v785, %v1034
        %v1036 = vpop.f32.mrb[0].mxu0
        %v1037 = vadd.f32 %v781, %v1036
        %v1038 = vpop.f32.mrb[0].mxu0
        %v1039 = vadd.f32 %v785, %v1038
        %1040 = vmatprep.mubr.bf16.mxu0 %v741
        %1041 = vmatmul.mubr.bf16.gmra.mrb[0].mxu0 %v740
        %v1042 = vpop.f32.mrb[0].mxu0
        %v1043 = vadd.f32 %v781, %v1042
        %v1044 = vpop.f32.mrb[0].mxu0
        %v1045 = vadd.f32 %v785, %v1044
        %v1046 = vpop.f32.mrb[0].mxu0
        %v1047 = vadd.f32 %v781, %v1046
        %v1048 = vpop.f32.mrb[0].mxu0
        %v1049 = vadd.f32 %v785, %v1048
        %1050 = vmatprep.mubr.bf16.mxu0 %v743
        %1051 = vmatmul.mubr.bf16.gmra.mrb[0].mxu0 %v742
        %v1052 = vpop.f32.mrb[0].mxu0
        %v1053 = vadd.f32 %v781, %v1052
        %v1054 = vpop.f32.mrb[0].mxu0
        %v1055 = vadd.f32 %v785, %v1054
        %v1056 = vpop.f32.mrb[0].mxu0
        %v1057 = vadd.f32 %v781, %v1056
        %v1058 = vpop.f32.mrb[0].mxu0
        %v1059 = vadd.f32 %v785, %v1058
        %1060 = vdwg.mxu0
        %vm1061 = vcmp.ge.f32.partialorder %v983, 0.0
        %vm1062 = vcmp.ge.f32.partialorder %v985, 0.0
        %vm1063 = vcmp.ge.f32.partialorder %v987, 0.0
        %vm1064 = vcmp.ge.f32.partialorder %v989, 0.0
        %vm1065 = vcmp.ge.f32.partialorder %v993, 0.0
        %vm1066 = vcmp.ge.f32.partialorder %v995, 0.0
        %vm1067 = vcmp.ge.f32.partialorder %v997, 0.0
        %vm1068 = vcmp.ge.f32.partialorder %v999, 0.0
        %vm1069 = vcmp.ge.f32.partialorder %v1003, 0.0
        %vm1070 = vcmp.ge.f32.partialorder %v1005, 0.0
        %vm1071 = vcmp.ge.f32.partialorder %v1007, 0.0
        %vm1072 = vcmp.ge.f32.partialorder %v1009, 0.0
        %vm1073 = vcmp.ge.f32.partialorder %v1013, 0.0
        %vm1074 = vcmp.ge.f32.partialorder %v1015, 0.0
        %vm1075 = vcmp.ge.f32.partialorder %v1017, 0.0
        %vm1076 = vcmp.ge.f32.partialorder %v1019, 0.0
        %vm1077 = vcmp.ge.f32.partialorder %v1023, 0.0
        %vm1078 = vcmp.ge.f32.partialorder %v1025, 0.0
        %vm1079 = vcmp.ge.f32.partialorder %v1027, 0.0
        %vm1080 = vcmp.ge.f32.partialorder %v1029, 0.0
        %vm1081 = vcmp.ge.f32.partialorder %v1033, 0.0
        %vm1082 = vcmp.ge.f32.partialorder %v1035, 0.0
        %vm1083 = vcmp.ge.f32.partialorder %v1037, 0.0
        %vm1084 = vcmp.ge.f32.partialorder %v1039, 0.0
        %vm1085 = vcmp.ge.f32.partialorder %v1043, 0.0
        %vm1086 = vcmp.ge.f32.partialorder %v1045, 0.0
        %vm1087 = vcmp.ge.f32.partialorder %v1047, 0.0
        %vm1088 = vcmp.ge.f32.partialorder %v1049, 0.0
        %vm1089 = vcmp.ge.f32.partialorder %v1053, 0.0
        %vm1090 = vcmp.ge.f32.partialorder %v1055, 0.0
        %vm1091 = vcmp.ge.f32.partialorder %v1057, 0.0
        %vm1092 = vcmp.ge.f32.partialorder %v1059, 0.0
        %v1093 = vmul.f32 %v983, 0.01
        %v1094 = vmul.f32 %v985, 0.01
        %v1095 = vmul.f32 %v987, 0.01
        %v1096 = vmul.f32 %v989, 0.01
        %v1097 = vmul.f32 %v993, 0.01
        %v1098 = vmul.f32 %v995, 0.01
        %v1099 = vmul.f32 %v997, 0.01
        %v1100 = vmul.f32 %v999, 0.01
        %v1101 = vmul.f32 %v1003, 0.01
        %v1102 = vmul.f32 %v1005, 0.01
        %v1103 = vmul.f32 %v1007, 0.01
        %v1104 = vmul.f32 %v1009, 0.01
        %v1105 = vmul.f32 %v1013, 0.01
        %v1106 = vmul.f32 %v1015, 0.01
        %v1107 = vmul.f32 %v1017, 0.01
        %v1108 = vmul.f32 %v1019, 0.01
        %v1109 = vmul.f32 %v1023, 0.01
        %v1110 = vmul.f32 %v1025, 0.01
        %v1111 = vmul.f32 %v1027, 0.01
        %v1112 = vmul.f32 %v1029, 0.01
        %v1113 = vmul.f32 %v1033, 0.01
        %v1114 = vmul.f32 %v1035, 0.01
        %v1115 = vmul.f32 %v1037, 0.01
        %v1116 = vmul.f32 %v1039, 0.01
        %v1117 = vmul.f32 %v1043, 0.01
        %v1118 = vmul.f32 %v1045, 0.01
        %v1119 = vmul.f32 %v1047, 0.01
        %v1120 = vmul.f32 %v1049, 0.01
        %v1121 = vmul.f32 %v1053, 0.01
        %v1122 = vmul.f32 %v1055, 0.01
        %v1123 = vmul.f32 %v1057, 0.01
        %v1124 = vmul.f32 %v1059, 0.01
        %v1125 = vsel %vm1061, %v983, %v1093
        %v1126 = vsel %vm1062, %v985, %v1094
        %v1127 = vsel %vm1063, %v987, %v1095
        %v1128 = vsel %vm1064, %v989, %v1096
        %v1129 = vsel %vm1065, %v993, %v1097
        %v1130 = vsel %vm1066, %v995, %v1098
        %v1131 = vsel %vm1067, %v997, %v1099
        %v1132 = vsel %vm1068, %v999, %v1100
        %v1133 = vsel %vm1069, %v1003, %v1101
        %v1134 = vsel %vm1070, %v1005, %v1102
        %v1135 = vsel %vm1071, %v1007, %v1103
        %v1136 = vsel %vm1072, %v1009, %v1104
        %v1137 = vsel %vm1073, %v1013, %v1105
        %v1138 = vsel %vm1074, %v1015, %v1106
        %v1139 = vsel %vm1075, %v1017, %v1107
        %v1140 = vsel %vm1076, %v1019, %v1108
        %v1141 = vsel %vm1077, %v1023, %v1109
        %v1142 = vsel %vm1078, %v1025, %v1110
        %v1143 = vsel %vm1079, %v1027, %v1111
        %v1144 = vsel %vm1080, %v1029, %v1112
        %v1145 = vsel %vm1081, %v1033, %v1113
        %v1146 = vsel %vm1082, %v1035, %v1114
        %v1147 = vsel %vm1083, %v1037, %v1115
        %v1148 = vsel %vm1084, %v1039, %v1116
        %v1149 = vsel %vm1085, %v1043, %v1117
        %v1150 = vsel %vm1086, %v1045, %v1118
        %v1151 = vsel %vm1087, %v1047, %v1119
        %v1152 = vsel %vm1088, %v1049, %v1120
        %v1153 = vsel %vm1089, %v1053, %v1121
        %v1154 = vsel %vm1090, %v1055, %v1122
        %v1155 = vsel %vm1091, %v1057, %v1123
        %v1156 = vsel %vm1092, %v1059, %v1124
        %v1157 = vpack.c.bf16 %v1127, %v1125
        %v1158 = vpack.c.bf16 %v1128, %v1126
        %v1159 = vpack.c.bf16 %v1131, %v1129
        %v1160 = vpack.c.bf16 %v1132, %v1130
        %v1161 = vpack.c.bf16 %v1135, %v1133
        %v1162 = vpack.c.bf16 %v1136, %v1134
        %v1163 = vpack.c.bf16 %v1139, %v1137
        %v1164 = vpack.c.bf16 %v1140, %v1138
        %v1165 = vpack.c.bf16 %v1143, %v1141
        %v1166 = vpack.c.bf16 %v1144, %v1142
        %v1167 = vpack.c.bf16 %v1147, %v1145
        %v1168 = vpack.c.bf16 %v1148, %v1146
        %v1169 = vpack.c.bf16 %v1151, %v1149
        %v1170 = vpack.c.bf16 %v1152, %v1150
        %v1171 = vpack.c.bf16 %v1155, %v1153
        %v1172 = vpack.c.bf16 %v1156, %v1154
        %v1173 = vld [vmem:[#allocation2] sm:$0xff]
        %v1174 = vld [vmem:[#allocation2 + $0x8] sm:$0xff]
        %v1175 = vld [vmem:[#allocation2 + $0x10] sm:$0xff]
        %v1176 = vld [vmem:[#allocation2 + $0x18] sm:$0xff]
        %v1177 = vld [vmem:[#allocation2 + $0x20] sm:$0xff]
        %v1178 = vld [vmem:[#allocation2 + $0x28] sm:$0xff]
        %v1179 = vld [vmem:[#allocation2 + $0x30] sm:$0xff]
        %v1180 = vld [vmem:[#allocation2 + $0x38] sm:$0xff]
        %v1181 = vld [vmem:[#allocation2 + $0x40] sm:$0xff]
        %v1182 = vld [vmem:[#allocation2 + $0x48] sm:$0xff]
        %v1183 = vld [vmem:[#allocation2 + $0x50] sm:$0xff]
        %v1184 = vld [vmem:[#allocation2 + $0x58] sm:$0xff]
        %v1185 = vld [vmem:[#allocation2 + $0x60] sm:$0xff]
        %v1186 = vld [vmem:[#allocation2 + $0x68] sm:$0xff]
        %v1187 = vld [vmem:[#allocation2 + $0x70] sm:$0xff]
        %v1188 = vld [vmem:[#allocation2 + $0x78] sm:$0xff]
        %v1189 = vld [vmem:[#allocation2 + $0x80] sm:$0xff]
        %v1190 = vld [vmem:[#allocation2 + $0x88] sm:$0xff]
        %v1191 = vld [vmem:[#allocation2 + $0x90] sm:$0xff]
        %v1192 = vld [vmem:[#allocation2 + $0x98] sm:$0xff]
        %v1193 = vld [vmem:[#allocation2 + $0xa0] sm:$0xff]
        %v1194 = vld [vmem:[#allocation2 + $0xa8] sm:$0xff]
        %v1195 = vld [vmem:[#allocation2 + $0xb0] sm:$0xff]
        %v1196 = vld [vmem:[#allocation2 + $0xb8] sm:$0xff]
        %v1197 = vld [vmem:[#allocation2 + $0xc0] sm:$0xff]
        %v1198 = vld [vmem:[#allocation2 + $0xc8] sm:$0xff]
        %v1199 = vld [vmem:[#allocation2 + $0xd0] sm:$0xff]
        %v1200 = vld [vmem:[#allocation2 + $0xd8] sm:$0xff]
        %v1201 = vld [vmem:[#allocation2 + $0xe0] sm:$0xff]
        %v1202 = vld [vmem:[#allocation2 + $0xe8] sm:$0xff]
        %v1203 = vld [vmem:[#allocation2 + $0xf0] sm:$0xff]
        %v1204 = vld [vmem:[#allocation2 + $0xf8] sm:$0xff]
        %v1205 = vld [vmem:[%s6] sm:$0x3]
        %v1207 = vlaneseq
        %v1208 = vshrl.u32 %v1207, 7
        %v1209 = vsub.s32 0, %v1208
        %v1210 = vrot.slane %v1205, %v1209
        %v1211 = vlaneseq
        %v1212 = vshrl.u32 %v1211, 7
        %v1213 = vsub.s32 1, %v1212
        %v1214 = vrot.slane %v1205, %v1213
        %v1249 = vunpack.c.l.b16 %v1173
        %v1250 = vunpack.c.h.b16 %v1173
        %v1251 = vunpack.c.l.b16 %v1174
        %v1252 = vunpack.c.h.b16 %v1174
        %v1253 = vunpack.c.l.b16 %v1175
        %v1254 = vunpack.c.h.b16 %v1175
        %v1255 = vunpack.c.l.b16 %v1176
        %v1256 = vunpack.c.h.b16 %v1176
        %v1257 = vunpack.c.l.b16 %v1177
        %v1258 = vunpack.c.h.b16 %v1177
        %v1259 = vunpack.c.l.b16 %v1178
        %v1260 = vunpack.c.h.b16 %v1178
        %v1261 = vunpack.c.l.b16 %v1179
        %v1262 = vunpack.c.h.b16 %v1179
        %v1263 = vunpack.c.l.b16 %v1180
        %v1264 = vunpack.c.h.b16 %v1180
        %v1265 = vunpack.c.l.b16 %v1181
        %v1266 = vunpack.c.h.b16 %v1181
        %v1267 = vunpack.c.l.b16 %v1182
        %v1268 = vunpack.c.h.b16 %v1182
        %v1269 = vunpack.c.l.b16 %v1183
        %v1270 = vunpack.c.h.b16 %v1183
        %v1271 = vunpack.c.l.b16 %v1184
        %v1272 = vunpack.c.h.b16 %v1184
        %v1273 = vunpack.c.l.b16 %v1185
        %v1274 = vunpack.c.h.b16 %v1185
        %v1275 = vunpack.c.l.b16 %v1186
        %v1276 = vunpack.c.h.b16 %v1186
        %v1277 = vunpack.c.l.b16 %v1187
        %v1278 = vunpack.c.h.b16 %v1187
        %v1279 = vunpack.c.l.b16 %v1188
        %v1280 = vunpack.c.h.b16 %v1188
        %v1281 = vunpack.c.l.b16 %v1189
        %v1282 = vunpack.c.h.b16 %v1189
        %v1283 = vunpack.c.l.b16 %v1190
        %v1284 = vunpack.c.h.b16 %v1190
        %v1285 = vunpack.c.l.b16 %v1191
        %v1286 = vunpack.c.h.b16 %v1191
        %v1287 = vunpack.c.l.b16 %v1192
        %v1288 = vunpack.c.h.b16 %v1192
        %v1289 = vunpack.c.l.b16 %v1193
        %v1290 = vunpack.c.h.b16 %v1193
        %v1291 = vunpack.c.l.b16 %v1194
        %v1292 = vunpack.c.h.b16 %v1194
        %v1293 = vunpack.c.l.b16 %v1195
        %v1294 = vunpack.c.h.b16 %v1195
        %v1295 = vunpack.c.l.b16 %v1196
        %v1296 = vunpack.c.h.b16 %v1196
        %v1297 = vunpack.c.l.b16 %v1197
        %v1298 = vunpack.c.h.b16 %v1197
        %v1299 = vunpack.c.l.b16 %v1198
        %v1300 = vunpack.c.h.b16 %v1198
        %v1301 = vunpack.c.l.b16 %v1199
        %v1302 = vunpack.c.h.b16 %v1199
        %v1303 = vunpack.c.l.b16 %v1200
        %v1304 = vunpack.c.h.b16 %v1200
        %v1305 = vunpack.c.l.b16 %v1201
        %v1306 = vunpack.c.h.b16 %v1201
        %v1307 = vunpack.c.l.b16 %v1202
        %v1308 = vunpack.c.h.b16 %v1202
        %v1309 = vunpack.c.l.b16 %v1203
        %v1310 = vunpack.c.h.b16 %v1203
        %v1311 = vunpack.c.l.b16 %v1204
        %v1312 = vunpack.c.h.b16 %v1204
        %v1313 = vpack.c.b16 %v1251, %v1249
        %v1314 = vpack.c.b16 %v1252, %v1250
        %v1315 = vpack.c.b16 %v1255, %v1253
        %v1316 = vpack.c.b16 %v1256, %v1254
        %v1317 = vpack.c.b16 %v1259, %v1257
        %v1318 = vpack.c.b16 %v1260, %v1258
        %v1319 = vpack.c.b16 %v1263, %v1261
        %v1320 = vpack.c.b16 %v1264, %v1262
        %v1321 = vpack.c.b16 %v1267, %v1265
        %v1322 = vpack.c.b16 %v1268, %v1266
        %v1323 = vpack.c.b16 %v1271, %v1269
        %v1324 = vpack.c.b16 %v1272, %v1270
        %v1325 = vpack.c.b16 %v1275, %v1273
        %v1326 = vpack.c.b16 %v1276, %v1274
        %v1327 = vpack.c.b16 %v1279, %v1277
        %v1328 = vpack.c.b16 %v1280, %v1278
        %v1329 = vpack.c.b16 %v1283, %v1281
        %v1330 = vpack.c.b16 %v1284, %v1282
        %v1331 = vpack.c.b16 %v1287, %v1285
        %v1332 = vpack.c.b16 %v1288, %v1286
        %v1333 = vpack.c.b16 %v1291, %v1289
        %v1334 = vpack.c.b16 %v1292, %v1290
        %v1335 = vpack.c.b16 %v1295, %v1293
        %v1336 = vpack.c.b16 %v1296, %v1294
        %v1337 = vpack.c.b16 %v1299, %v1297
        %v1338 = vpack.c.b16 %v1300, %v1298
        %v1339 = vpack.c.b16 %v1303, %v1301
        %v1340 = vpack.c.b16 %v1304, %v1302
        %v1341 = vpack.c.b16 %v1307, %v1305
        %v1342 = vpack.c.b16 %v1308, %v1306
        %v1343 = vpack.c.b16 %v1311, %v1309
        %v1344 = vpack.c.b16 %v1312, %v1310
        %1377 = vmatprep.subr.bf16.mxu0 %v1314
        %1378 = vmatpush1.bf16.msra.mxu0 %v1313
        %1379 = vmatprep.subr.bf16.mxu0 %v1316
        %1380 = vmatpush1.bf16.msra.mxu0 %v1315
        %1381 = vmatprep.subr.bf16.mxu0 %v1318
        %1382 = vmatpush1.bf16.msra.mxu0 %v1317
        %1383 = vmatprep.subr.bf16.mxu0 %v1320
        %1384 = vmatpush1.bf16.msra.mxu0 %v1319
        %1385 = vmatprep.subr.bf16.mxu0 %v1322
        %1386 = vmatpush1.bf16.msra.mxu0 %v1321
        %1387 = vmatprep.subr.bf16.mxu0 %v1324
        %1388 = vmatpush1.bf16.msra.mxu0 %v1323
        %1389 = vmatprep.subr.bf16.mxu0 %v1326
        %1390 = vmatpush1.bf16.msra.mxu0 %v1325
        %1391 = vmatprep.subr.bf16.mxu0 %v1328
        %1392 = vmatpush1.bf16.msra.mxu0 %v1327
        %1393 = vmatprep.subr.bf16.mxu0 %v1330
        %1394 = vmatpush1.bf16.msra.mxu0 %v1329
        %1395 = vmatprep.subr.bf16.mxu0 %v1332
        %1396 = vmatpush1.bf16.msra.mxu0 %v1331
        %1397 = vmatprep.subr.bf16.mxu0 %v1334
        %1398 = vmatpush1.bf16.msra.mxu0 %v1333
        %1399 = vmatprep.subr.bf16.mxu0 %v1336
        %1400 = vmatpush1.bf16.msra.mxu0 %v1335
        %1401 = vmatprep.subr.bf16.mxu0 %v1338
        %1402 = vmatpush1.bf16.msra.mxu0 %v1337
        %1403 = vmatprep.subr.bf16.mxu0 %v1340
        %1404 = vmatpush1.bf16.msra.mxu0 %v1339
        %1405 = vmatprep.subr.bf16.mxu0 %v1342
        %1406 = vmatpush1.bf16.msra.mxu0 %v1341
        %1407 = vmatprep.subr.bf16.mxu0 %v1344
        %1408 = vmatpush1.bf16.msra.mxu0 %v1343
        %1409 = vmatprep.mubr.bf16.mxu0 %v1158
        %1410 = vmatmul.mubr.bf16.gmra.mrb[0].mxu0 %v1157
        %v1411 = vpop.f32.mrb[0].mxu0
        %v1412 = vadd.f32 %v1210, %v1411
        %v1413 = vpop.f32.mrb[0].mxu0
        %v1414 = vadd.f32 %v1214, %v1413
        %v1415 = vpop.f32.mrb[0].mxu0
        %v1416 = vadd.f32 %v1210, %v1415
        %v1417 = vpop.f32.mrb[0].mxu0
        %v1418 = vadd.f32 %v1214, %v1417
        %1419 = vmatprep.mubr.bf16.mxu0 %v1160
        %1420 = vmatmul.mubr.bf16.gmra.mrb[0].mxu0 %v1159
        %v1421 = vpop.f32.mrb[0].mxu0
        %v1422 = vadd.f32 %v1210, %v1421
        %v1423 = vpop.f32.mrb[0].mxu0
        %v1424 = vadd.f32 %v1214, %v1423
        %v1425 = vpop.f32.mrb[0].mxu0
        %v1426 = vadd.f32 %v1210, %v1425
        %v1427 = vpop.f32.mrb[0].mxu0
        %v1428 = vadd.f32 %v1214, %v1427
        %1429 = vmatprep.mubr.bf16.mxu0 %v1162
        %1430 = vmatmul.mubr.bf16.gmra.mrb[0].mxu0 %v1161
        %v1431 = vpop.f32.mrb[0].mxu0
        %v1432 = vadd.f32 %v1210, %v1431
        %v1433 = vpop.f32.mrb[0].mxu0
        %v1434 = vadd.f32 %v1214, %v1433
        %v1435 = vpop.f32.mrb[0].mxu0
        %v1436 = vadd.f32 %v1210, %v1435
        %v1437 = vpop.f32.mrb[0].mxu0
        %v1438 = vadd.f32 %v1214, %v1437
        %1439 = vmatprep.mubr.bf16.mxu0 %v1164
        %1440 = vmatmul.mubr.bf16.gmra.mrb[0].mxu0 %v1163
        %v1441 = vpop.f32.mrb[0].mxu0
        %v1442 = vadd.f32 %v1210, %v1441
        %v1443 = vpop.f32.mrb[0].mxu0
        %v1444 = vadd.f32 %v1214, %v1443
        %v1445 = vpop.f32.mrb[0].mxu0
        %v1446 = vadd.f32 %v1210, %v1445
        %v1447 = vpop.f32.mrb[0].mxu0
        %v1448 = vadd.f32 %v1214, %v1447
        %1449 = vmatprep.mubr.bf16.mxu0 %v1166
        %1450 = vmatmul.mubr.bf16.gmra.mrb[0].mxu0 %v1165
        %v1451 = vpop.f32.mrb[0].mxu0
        %v1452 = vadd.f32 %v1210, %v1451
        %v1453 = vpop.f32.mrb[0].mxu0
        %v1454 = vadd.f32 %v1214, %v1453
        %v1455 = vpop.f32.mrb[0].mxu0
        %v1456 = vadd.f32 %v1210, %v1455
        %v1457 = vpop.f32.mrb[0].mxu0
        %v1458 = vadd.f32 %v1214, %v1457
        %1459 = vmatprep.mubr.bf16.mxu0 %v1168
        %1460 = vmatmul.mubr.bf16.gmra.mrb[0].mxu0 %v1167
        %v1461 = vpop.f32.mrb[0].mxu0
        %v1462 = vadd.f32 %v1210, %v1461
        %v1463 = vpop.f32.mrb[0].mxu0
        %v1464 = vadd.f32 %v1214, %v1463
        %v1465 = vpop.f32.mrb[0].mxu0
        %v1466 = vadd.f32 %v1210, %v1465
        %v1467 = vpop.f32.mrb[0].mxu0
        %v1468 = vadd.f32 %v1214, %v1467
        %1469 = vmatprep.mubr.bf16.mxu0 %v1170
        %1470 = vmatmul.mubr.bf16.gmra.mrb[0].mxu0 %v1169
        %v1471 = vpop.f32.mrb[0].mxu0
        %v1472 = vadd.f32 %v1210, %v1471
        %v1473 = vpop.f32.mrb[0].mxu0
        %v1474 = vadd.f32 %v1214, %v1473
        %v1475 = vpop.f32.mrb[0].mxu0
        %v1476 = vadd.f32 %v1210, %v1475
        %v1477 = vpop.f32.mrb[0].mxu0
        %v1478 = vadd.f32 %v1214, %v1477
        %1479 = vmatprep.mubr.bf16.mxu0 %v1172
        %1480 = vmatmul.mubr.bf16.gmra.mrb[0].mxu0 %v1171
        %v1481 = vpop.f32.mrb[0].mxu0
        %v1482 = vadd.f32 %v1210, %v1481
        %v1483 = vpop.f32.mrb[0].mxu0
        %v1484 = vadd.f32 %v1214, %v1483
        %v1485 = vpop.f32.mrb[0].mxu0
        %v1486 = vadd.f32 %v1210, %v1485
        %v1487 = vpop.f32.mrb[0].mxu0
        %v1488 = vadd.f32 %v1214, %v1487
        %1489 = vdwg.mxu0
        %vm1490 = vcmp.ge.f32.partialorder %v1412, 0.0
        %vm1491 = vcmp.ge.f32.partialorder %v1414, 0.0
        %vm1492 = vcmp.ge.f32.partialorder %v1416, 0.0
        %vm1493 = vcmp.ge.f32.partialorder %v1418, 0.0
        %vm1494 = vcmp.ge.f32.partialorder %v1422, 0.0
        %vm1495 = vcmp.ge.f32.partialorder %v1424, 0.0
        %vm1496 = vcmp.ge.f32.partialorder %v1426, 0.0
        %vm1497 = vcmp.ge.f32.partialorder %v1428, 0.0
        %vm1498 = vcmp.ge.f32.partialorder %v1432, 0.0
        %vm1499 = vcmp.ge.f32.partialorder %v1434, 0.0
        %vm1500 = vcmp.ge.f32.partialorder %v1436, 0.0
        %vm1501 = vcmp.ge.f32.partialorder %v1438, 0.0
        %vm1502 = vcmp.ge.f32.partialorder %v1442, 0.0
        %vm1503 = vcmp.ge.f32.partialorder %v1444, 0.0
        %vm1504 = vcmp.ge.f32.partialorder %v1446, 0.0
        %vm1505 = vcmp.ge.f32.partialorder %v1448, 0.0
        %vm1506 = vcmp.ge.f32.partialorder %v1452, 0.0
        %vm1507 = vcmp.ge.f32.partialorder %v1454, 0.0
        %vm1508 = vcmp.ge.f32.partialorder %v1456, 0.0
        %vm1509 = vcmp.ge.f32.partialorder %v1458, 0.0
        %vm1510 = vcmp.ge.f32.partialorder %v1462, 0.0
        %vm1511 = vcmp.ge.f32.partialorder %v1464, 0.0
        %vm1512 = vcmp.ge.f32.partialorder %v1466, 0.0
        %vm1513 = vcmp.ge.f32.partialorder %v1468, 0.0
        %vm1514 = vcmp.ge.f32.partialorder %v1472, 0.0
        %vm1515 = vcmp.ge.f32.partialorder %v1474, 0.0
        %vm1516 = vcmp.ge.f32.partialorder %v1476, 0.0
        %vm1517 = vcmp.ge.f32.partialorder %v1478, 0.0
        %vm1518 = vcmp.ge.f32.partialorder %v1482, 0.0
        %vm1519 = vcmp.ge.f32.partialorder %v1484, 0.0
        %vm1520 = vcmp.ge.f32.partialorder %v1486, 0.0
        %vm1521 = vcmp.ge.f32.partialorder %v1488, 0.0
        %v1522 = vmul.f32 %v1412, 0.01
        %v1523 = vmul.f32 %v1414, 0.01
        %v1524 = vmul.f32 %v1416, 0.01
        %v1525 = vmul.f32 %v1418, 0.01
        %v1526 = vmul.f32 %v1422, 0.01
        %v1527 = vmul.f32 %v1424, 0.01
        %v1528 = vmul.f32 %v1426, 0.01
        %v1529 = vmul.f32 %v1428, 0.01
        %v1530 = vmul.f32 %v1432, 0.01
        %v1531 = vmul.f32 %v1434, 0.01
        %v1532 = vmul.f32 %v1436, 0.01
        %v1533 = vmul.f32 %v1438, 0.01
        %v1534 = vmul.f32 %v1442, 0.01
        %v1535 = vmul.f32 %v1444, 0.01
        %v1536 = vmul.f32 %v1446, 0.01
        %v1537 = vmul.f32 %v1448, 0.01
        %v1538 = vmul.f32 %v1452, 0.01
        %v1539 = vmul.f32 %v1454, 0.01
        %v1540 = vmul.f32 %v1456, 0.01
        %v1541 = vmul.f32 %v1458, 0.01
        %v1542 = vmul.f32 %v1462, 0.01
        %v1543 = vmul.f32 %v1464, 0.01
        %v1544 = vmul.f32 %v1466, 0.01
        %v1545 = vmul.f32 %v1468, 0.01
        %v1546 = vmul.f32 %v1472, 0.01
        %v1547 = vmul.f32 %v1474, 0.01
        %v1548 = vmul.f32 %v1476, 0.01
        %v1549 = vmul.f32 %v1478, 0.01
        %v1550 = vmul.f32 %v1482, 0.01
        %v1551 = vmul.f32 %v1484, 0.01
        %v1552 = vmul.f32 %v1486, 0.01
        %v1553 = vmul.f32 %v1488, 0.01
        %v1554 = vsel %vm1490, %v1412, %v1522
        %v1555 = vsel %vm1491, %v1414, %v1523
        %v1556 = vsel %vm1492, %v1416, %v1524
        %v1557 = vsel %vm1493, %v1418, %v1525
        %v1558 = vsel %vm1494, %v1422, %v1526
        %v1559 = vsel %vm1495, %v1424, %v1527
        %v1560 = vsel %vm1496, %v1426, %v1528
        %v1561 = vsel %vm1497, %v1428, %v1529
        %v1562 = vsel %vm1498, %v1432, %v1530
        %v1563 = vsel %vm1499, %v1434, %v1531
        %v1564 = vsel %vm1500, %v1436, %v1532
        %v1565 = vsel %vm1501, %v1438, %v1533
        %v1566 = vsel %vm1502, %v1442, %v1534
        %v1567 = vsel %vm1503, %v1444, %v1535
        %v1568 = vsel %vm1504, %v1446, %v1536
        %v1569 = vsel %vm1505, %v1448, %v1537
        %v1570 = vsel %vm1506, %v1452, %v1538
        %v1571 = vsel %vm1507, %v1454, %v1539
        %v1572 = vsel %vm1508, %v1456, %v1540
        %v1573 = vsel %vm1509, %v1458, %v1541
        %v1574 = vsel %vm1510, %v1462, %v1542
        %v1575 = vsel %vm1511, %v1464, %v1543
        %v1576 = vsel %vm1512, %v1466, %v1544
        %v1577 = vsel %vm1513, %v1468, %v1545
        %v1578 = vsel %vm1514, %v1472, %v1546
        %v1579 = vsel %vm1515, %v1474, %v1547
        %v1580 = vsel %vm1516, %v1476, %v1548
        %v1581 = vsel %vm1517, %v1478, %v1549
        %v1582 = vsel %vm1518, %v1482, %v1550
        %v1583 = vsel %vm1519, %v1484, %v1551
        %v1584 = vsel %vm1520, %v1486, %v1552
        %v1585 = vsel %vm1521, %v1488, %v1553
        %v1586 = vpack.c.bf16 %v1556, %v1554
        %v1587 = vpack.c.bf16 %v1557, %v1555
        %v1588 = vpack.c.bf16 %v1560, %v1558
        %v1589 = vpack.c.bf16 %v1561, %v1559
        %v1590 = vpack.c.bf16 %v1564, %v1562
        %v1591 = vpack.c.bf16 %v1565, %v1563
        %v1592 = vpack.c.bf16 %v1568, %v1566
        %v1593 = vpack.c.bf16 %v1569, %v1567
        %v1594 = vpack.c.bf16 %v1572, %v1570
        %v1595 = vpack.c.bf16 %v1573, %v1571
        %v1596 = vpack.c.bf16 %v1576, %v1574
        %v1597 = vpack.c.bf16 %v1577, %v1575
        %v1598 = vpack.c.bf16 %v1580, %v1578
        %v1599 = vpack.c.bf16 %v1581, %v1579
        %v1600 = vpack.c.bf16 %v1584, %v1582
        %v1601 = vpack.c.bf16 %v1585, %v1583
        %v1602 = vld [vmem:[#allocation5] sm:$0xff]
        %v1603 = vld [vmem:[#allocation5 + $0x8] sm:$0xff]
        %v1604 = vld [vmem:[#allocation5 + $0x10] sm:$0xff]
        %v1605 = vld [vmem:[#allocation5 + $0x18] sm:$0xff]
        %v1606 = vld [vmem:[#allocation5 + $0x20] sm:$0xff]
        %v1607 = vld [vmem:[#allocation5 + $0x28] sm:$0xff]
        %v1608 = vld [vmem:[#allocation5 + $0x30] sm:$0xff]
        %v1609 = vld [vmem:[#allocation5 + $0x38] sm:$0xff]
        %v1610 = vld [vmem:[#allocation5 + $0x40] sm:$0xff]
        %v1611 = vld [vmem:[#allocation5 + $0x48] sm:$0xff]
        %v1612 = vld [vmem:[#allocation5 + $0x50] sm:$0xff]
        %v1613 = vld [vmem:[#allocation5 + $0x58] sm:$0xff]
        %v1614 = vld [vmem:[#allocation5 + $0x60] sm:$0xff]
        %v1615 = vld [vmem:[#allocation5 + $0x68] sm:$0xff]
        %v1616 = vld [vmem:[#allocation5 + $0x70] sm:$0xff]
        %v1617 = vld [vmem:[#allocation5 + $0x78] sm:$0xff]
        %v1618 = vld [vmem:[#allocation5 + $0x80] sm:$0xff]
        %v1619 = vld [vmem:[#allocation5 + $0x88] sm:$0xff]
        %v1620 = vld [vmem:[#allocation5 + $0x90] sm:$0xff]
        %v1621 = vld [vmem:[#allocation5 + $0x98] sm:$0xff]
        %v1622 = vld [vmem:[#allocation5 + $0xa0] sm:$0xff]
        %v1623 = vld [vmem:[#allocation5 + $0xa8] sm:$0xff]
        %v1624 = vld [vmem:[#allocation5 + $0xb0] sm:$0xff]
        %v1625 = vld [vmem:[#allocation5 + $0xb8] sm:$0xff]
        %v1626 = vld [vmem:[#allocation5 + $0xc0] sm:$0xff]
        %v1627 = vld [vmem:[#allocation5 + $0xc8] sm:$0xff]
        %v1628 = vld [vmem:[#allocation5 + $0xd0] sm:$0xff]
        %v1629 = vld [vmem:[#allocation5 + $0xd8] sm:$0xff]
        %v1630 = vld [vmem:[#allocation5 + $0xe0] sm:$0xff]
        %v1631 = vld [vmem:[#allocation5 + $0xe8] sm:$0xff]
        %v1632 = vld [vmem:[#allocation5 + $0xf0] sm:$0xff]
        %v1633 = vld [vmem:[#allocation5 + $0xf8] sm:$0xff]
        %v1634 = vld [vmem:[%s8] sm:$0x3]
        %v1636 = vlaneseq
        %v1637 = vshrl.u32 %v1636, 7
        %v1638 = vsub.s32 0, %v1637
        %v1639 = vrot.slane %v1634, %v1638
        %v1640 = vlaneseq
        %v1641 = vshrl.u32 %v1640, 7
        %v1642 = vsub.s32 1, %v1641
        %v1643 = vrot.slane %v1634, %v1642
        %v1678 = vunpack.c.l.b16 %v1602
        %v1679 = vunpack.c.h.b16 %v1602
        %v1680 = vunpack.c.l.b16 %v1603
        %v1681 = vunpack.c.h.b16 %v1603
        %v1682 = vunpack.c.l.b16 %v1604
        %v1683 = vunpack.c.h.b16 %v1604
        %v1684 = vunpack.c.l.b16 %v1605
        %v1685 = vunpack.c.h.b16 %v1605
        %v1686 = vunpack.c.l.b16 %v1606
        %v1687 = vunpack.c.h.b16 %v1606
        %v1688 = vunpack.c.l.b16 %v1607
        %v1689 = vunpack.c.h.b16 %v1607
        %v1690 = vunpack.c.l.b16 %v1608
        %v1691 = vunpack.c.h.b16 %v1608
        %v1692 = vunpack.c.l.b16 %v1609
        %v1693 = vunpack.c.h.b16 %v1609
        %v1694 = vunpack.c.l.b16 %v1610
        %v1695 = vunpack.c.h.b16 %v1610
        %v1696 = vunpack.c.l.b16 %v1611
        %v1697 = vunpack.c.h.b16 %v1611
        %v1698 = vunpack.c.l.b16 %v1612
        %v1699 = vunpack.c.h.b16 %v1612
        %v1700 = vunpack.c.l.b16 %v1613
        %v1701 = vunpack.c.h.b16 %v1613
        %v1702 = vunpack.c.l.b16 %v1614
        %v1703 = vunpack.c.h.b16 %v1614
        %v1704 = vunpack.c.l.b16 %v1615
        %v1705 = vunpack.c.h.b16 %v1615
        %v1706 = vunpack.c.l.b16 %v1616
        %v1707 = vunpack.c.h.b16 %v1616
        %v1708 = vunpack.c.l.b16 %v1617
        %v1709 = vunpack.c.h.b16 %v1617
        %v1710 = vunpack.c.l.b16 %v1618
        %v1711 = vunpack.c.h.b16 %v1618
        %v1712 = vunpack.c.l.b16 %v1619
        %v1713 = vunpack.c.h.b16 %v1619
        %v1714 = vunpack.c.l.b16 %v1620
        %v1715 = vunpack.c.h.b16 %v1620
        %v1716 = vunpack.c.l.b16 %v1621
        %v1717 = vunpack.c.h.b16 %v1621
        %v1718 = vunpack.c.l.b16 %v1622
        %v1719 = vunpack.c.h.b16 %v1622
        %v1720 = vunpack.c.l.b16 %v1623
        %v1721 = vunpack.c.h.b16 %v1623
        %v1722 = vunpack.c.l.b16 %v1624
        %v1723 = vunpack.c.h.b16 %v1624
        %v1724 = vunpack.c.l.b16 %v1625
        %v1725 = vunpack.c.h.b16 %v1625
        %v1726 = vunpack.c.l.b16 %v1626
        %v1727 = vunpack.c.h.b16 %v1626
        %v1728 = vunpack.c.l.b16 %v1627
        %v1729 = vunpack.c.h.b16 %v1627
        %v1730 = vunpack.c.l.b16 %v1628
        %v1731 = vunpack.c.h.b16 %v1628
        %v1732 = vunpack.c.l.b16 %v1629
        %v1733 = vunpack.c.h.b16 %v1629
        %v1734 = vunpack.c.l.b16 %v1630
        %v1735 = vunpack.c.h.b16 %v1630
        %v1736 = vunpack.c.l.b16 %v1631
        %v1737 = vunpack.c.h.b16 %v1631
        %v1738 = vunpack.c.l.b16 %v1632
        %v1739 = vunpack.c.h.b16 %v1632
        %v1740 = vunpack.c.l.b16 %v1633
        %v1741 = vunpack.c.h.b16 %v1633
        %v1742 = vpack.c.b16 %v1680, %v1678
        %v1743 = vpack.c.b16 %v1681, %v1679
        %v1744 = vpack.c.b16 %v1684, %v1682
        %v1745 = vpack.c.b16 %v1685, %v1683
        %v1746 = vpack.c.b16 %v1688, %v1686
        %v1747 = vpack.c.b16 %v1689, %v1687
        %v1748 = vpack.c.b16 %v1692, %v1690
        %v1749 = vpack.c.b16 %v1693, %v1691
        %v1750 = vpack.c.b16 %v1696, %v1694
        %v1751 = vpack.c.b16 %v1697, %v1695
        %v1752 = vpack.c.b16 %v1700, %v1698
        %v1753 = vpack.c.b16 %v1701, %v1699
        %v1754 = vpack.c.b16 %v1704, %v1702
        %v1755 = vpack.c.b16 %v1705, %v1703
        %v1756 = vpack.c.b16 %v1708, %v1706
        %v1757 = vpack.c.b16 %v1709, %v1707
        %v1758 = vpack.c.b16 %v1712, %v1710
        %v1759 = vpack.c.b16 %v1713, %v1711
        %v1760 = vpack.c.b16 %v1716, %v1714
        %v1761 = vpack.c.b16 %v1717, %v1715
        %v1762 = vpack.c.b16 %v1720, %v1718
        %v1763 = vpack.c.b16 %v1721, %v1719
        %v1764 = vpack.c.b16 %v1724, %v1722
        %v1765 = vpack.c.b16 %v1725, %v1723
        %v1766 = vpack.c.b16 %v1728, %v1726
        %v1767 = vpack.c.b16 %v1729, %v1727
        %v1768 = vpack.c.b16 %v1732, %v1730
        %v1769 = vpack.c.b16 %v1733, %v1731
        %v1770 = vpack.c.b16 %v1736, %v1734
        %v1771 = vpack.c.b16 %v1737, %v1735
        %v1772 = vpack.c.b16 %v1740, %v1738
        %v1773 = vpack.c.b16 %v1741, %v1739
        %1806 = vmatprep.subr.bf16.mxu0 %v1743
        %1807 = vmatpush1.bf16.msra.mxu0 %v1742
        %1808 = vmatprep.subr.bf16.mxu0 %v1745
        %1809 = vmatpush1.bf16.msra.mxu0 %v1744
        %1810 = vmatprep.subr.bf16.mxu0 %v1747
        %1811 = vmatpush1.bf16.msra.mxu0 %v1746
        %1812 = vmatprep.subr.bf16.mxu0 %v1749
        %1813 = vmatpush1.bf16.msra.mxu0 %v1748
        %1814 = vmatprep.subr.bf16.mxu0 %v1751
        %1815 = vmatpush1.bf16.msra.mxu0 %v1750
        %1816 = vmatprep.subr.bf16.mxu0 %v1753
        %1817 = vmatpush1.bf16.msra.mxu0 %v1752
        %1818 = vmatprep.subr.bf16.mxu0 %v1755
        %1819 = vmatpush1.bf16.msra.mxu0 %v1754
        %1820 = vmatprep.subr.bf16.mxu0 %v1757
        %1821 = vmatpush1.bf16.msra.mxu0 %v1756
        %1822 = vmatprep.subr.bf16.mxu0 %v1759
        %1823 = vmatpush1.bf16.msra.mxu0 %v1758
        %1824 = vmatprep.subr.bf16.mxu0 %v1761
        %1825 = vmatpush1.bf16.msra.mxu0 %v1760
        %1826 = vmatprep.subr.bf16.mxu0 %v1763
        %1827 = vmatpush1.bf16.msra.mxu0 %v1762
        %1828 = vmatprep.subr.bf16.mxu0 %v1765
        %1829 = vmatpush1.bf16.msra.mxu0 %v1764
        %1830 = vmatprep.subr.bf16.mxu0 %v1767
        %1831 = vmatpush1.bf16.msra.mxu0 %v1766
        %1832 = vmatprep.subr.bf16.mxu0 %v1769
        %1833 = vmatpush1.bf16.msra.mxu0 %v1768
        %1834 = vmatprep.subr.bf16.mxu0 %v1771
        %1835 = vmatpush1.bf16.msra.mxu0 %v1770
        %1836 = vmatprep.subr.bf16.mxu0 %v1773
        %1837 = vmatpush1.bf16.msra.mxu0 %v1772
        %1838 = vmatprep.mubr.bf16.mxu0 %v1587
        %1839 = vmatmul.mubr.bf16.gmra.mrb[0].mxu0 %v1586
        %v1840 = vpop.f32.mrb[0].mxu0
        %v1841 = vadd.f32 %v1639, %v1840
        %v1842 = vpop.f32.mrb[0].mxu0
        %v1843 = vadd.f32 %v1643, %v1842
        %v1844 = vpop.f32.mrb[0].mxu0
        %v1845 = vadd.f32 %v1639, %v1844
        %v1846 = vpop.f32.mrb[0].mxu0
        %v1847 = vadd.f32 %v1643, %v1846
        %1848 = vmatprep.mubr.bf16.mxu0 %v1589
        %1849 = vmatmul.mubr.bf16.gmra.mrb[0].mxu0 %v1588
        %v1850 = vpop.f32.mrb[0].mxu0
        %v1851 = vadd.f32 %v1639, %v1850
        %v1852 = vpop.f32.mrb[0].mxu0
        %v1853 = vadd.f32 %v1643, %v1852
        %v1854 = vpop.f32.mrb[0].mxu0
        %v1855 = vadd.f32 %v1639, %v1854
        %v1856 = vpop.f32.mrb[0].mxu0
        %v1857 = vadd.f32 %v1643, %v1856
        %1858 = vmatprep.mubr.bf16.mxu0 %v1591
        %1859 = vmatmul.mubr.bf16.gmra.mrb[0].mxu0 %v1590
        %v1860 = vpop.f32.mrb[0].mxu0
        %v1861 = vadd.f32 %v1639, %v1860
        %v1862 = vpop.f32.mrb[0].mxu0
        %v1863 = vadd.f32 %v1643, %v1862
        %v1864 = vpop.f32.mrb[0].mxu0
        %v1865 = vadd.f32 %v1639, %v1864
        %v1866 = vpop.f32.mrb[0].mxu0
        %v1867 = vadd.f32 %v1643, %v1866
        %1868 = vmatprep.mubr.bf16.mxu0 %v1593
        %1869 = vmatmul.mubr.bf16.gmra.mrb[0].mxu0 %v1592
        %v1870 = vpop.f32.mrb[0].mxu0
        %v1871 = vadd.f32 %v1639, %v1870
        %v1872 = vpop.f32.mrb[0].mxu0
        %v1873 = vadd.f32 %v1643, %v1872
        %v1874 = vpop.f32.mrb[0].mxu0
        %v1875 = vadd.f32 %v1639, %v1874
        %v1876 = vpop.f32.mrb[0].mxu0
        %v1877 = vadd.f32 %v1643, %v1876
        %1878 = vmatprep.mubr.bf16.mxu0 %v1595
        %1879 = vmatmul.mubr.bf16.gmra.mrb[0].mxu0 %v1594
        %v1880 = vpop.f32.mrb[0].mxu0
        %v1881 = vadd.f32 %v1639, %v1880
        %v1882 = vpop.f32.mrb[0].mxu0
        %v1883 = vadd.f32 %v1643, %v1882
        %v1884 = vpop.f32.mrb[0].mxu0
        %v1885 = vadd.f32 %v1639, %v1884
        %v1886 = vpop.f32.mrb[0].mxu0
        %v1887 = vadd.f32 %v1643, %v1886
        %1888 = vmatprep.mubr.bf16.mxu0 %v1597
        %1889 = vmatmul.mubr.bf16.gmra.mrb[0].mxu0 %v1596
        %v1890 = vpop.f32.mrb[0].mxu0
        %v1891 = vadd.f32 %v1639, %v1890
        %v1892 = vpop.f32.mrb[0].mxu0
        %v1893 = vadd.f32 %v1643, %v1892
        %v1894 = vpop.f32.mrb[0].mxu0
        %v1895 = vadd.f32 %v1639, %v1894
        %v1896 = vpop.f32.mrb[0].mxu0
        %v1897 = vadd.f32 %v1643, %v1896
        %1898 = vmatprep.mubr.bf16.mxu0 %v1599
        %1899 = vmatmul.mubr.bf16.gmra.mrb[0].mxu0 %v1598
        %v1900 = vpop.f32.mrb[0].mxu0
        %v1901 = vadd.f32 %v1639, %v1900
        %v1902 = vpop.f32.mrb[0].mxu0
        %v1903 = vadd.f32 %v1643, %v1902
        %v1904 = vpop.f32.mrb[0].mxu0
        %v1905 = vadd.f32 %v1639, %v1904
        %v1906 = vpop.f32.mrb[0].mxu0
        %v1907 = vadd.f32 %v1643, %v1906
        %1908 = vmatprep.mubr.bf16.mxu0 %v1601
        %1909 = vmatmul.mubr.bf16.gmra.mrb[0].mxu0 %v1600
        %v1910 = vpop.f32.mrb[0].mxu0
        %v1911 = vadd.f32 %v1639, %v1910
        %v1912 = vpop.f32.mrb[0].mxu0
        %v1913 = vadd.f32 %v1643, %v1912
        %v1914 = vpop.f32.mrb[0].mxu0
        %v1915 = vadd.f32 %v1639, %v1914
        %v1916 = vpop.f32.mrb[0].mxu0
        %v1917 = vadd.f32 %v1643, %v1916
        %1918 = vdwg.mxu0
        %vm1919 = vcmp.ge.f32.partialorder %v1841, 0.0
        %vm1920 = vcmp.ge.f32.partialorder %v1843, 0.0
        %vm1921 = vcmp.ge.f32.partialorder %v1845, 0.0
        %vm1922 = vcmp.ge.f32.partialorder %v1847, 0.0
        %vm1923 = vcmp.ge.f32.partialorder %v1851, 0.0
        %vm1924 = vcmp.ge.f32.partialorder %v1853, 0.0
        %vm1925 = vcmp.ge.f32.partialorder %v1855, 0.0
        %vm1926 = vcmp.ge.f32.partialorder %v1857, 0.0
        %vm1927 = vcmp.ge.f32.partialorder %v1861, 0.0
        %vm1928 = vcmp.ge.f32.partialorder %v1863, 0.0
        %vm1929 = vcmp.ge.f32.partialorder %v1865, 0.0
        %vm1930 = vcmp.ge.f32.partialorder %v1867, 0.0
        %vm1931 = vcmp.ge.f32.partialorder %v1871, 0.0
        %vm1932 = vcmp.ge.f32.partialorder %v1873, 0.0
        %vm1933 = vcmp.ge.f32.partialorder %v1875, 0.0
        %vm1934 = vcmp.ge.f32.partialorder %v1877, 0.0
        %vm1935 = vcmp.ge.f32.partialorder %v1881, 0.0
        %vm1936 = vcmp.ge.f32.partialorder %v1883, 0.0
        %vm1937 = vcmp.ge.f32.partialorder %v1885, 0.0
        %vm1938 = vcmp.ge.f32.partialorder %v1887, 0.0
        %vm1939 = vcmp.ge.f32.partialorder %v1891, 0.0
        %vm1940 = vcmp.ge.f32.partialorder %v1893, 0.0
        %vm1941 = vcmp.ge.f32.partialorder %v1895, 0.0
        %vm1942 = vcmp.ge.f32.partialorder %v1897, 0.0
        %vm1943 = vcmp.ge.f32.partialorder %v1901, 0.0
        %vm1944 = vcmp.ge.f32.partialorder %v1903, 0.0
        %vm1945 = vcmp.ge.f32.partialorder %v1905, 0.0
        %vm1946 = vcmp.ge.f32.partialorder %v1907, 0.0
        %vm1947 = vcmp.ge.f32.partialorder %v1911, 0.0
        %vm1948 = vcmp.ge.f32.partialorder %v1913, 0.0
        %vm1949 = vcmp.ge.f32.partialorder %v1915, 0.0
        %vm1950 = vcmp.ge.f32.partialorder %v1917, 0.0
        %v1951 = vmul.f32 %v1841, 0.01
        %v1952 = vmul.f32 %v1843, 0.01
        %v1953 = vmul.f32 %v1845, 0.01
        %v1954 = vmul.f32 %v1847, 0.01
        %v1955 = vmul.f32 %v1851, 0.01
        %v1956 = vmul.f32 %v1853, 0.01
        %v1957 = vmul.f32 %v1855, 0.01
        %v1958 = vmul.f32 %v1857, 0.01
        %v1959 = vmul.f32 %v1861, 0.01
        %v1960 = vmul.f32 %v1863, 0.01
        %v1961 = vmul.f32 %v1865, 0.01
        %v1962 = vmul.f32 %v1867, 0.01
        %v1963 = vmul.f32 %v1871, 0.01
        %v1964 = vmul.f32 %v1873, 0.01
        %v1965 = vmul.f32 %v1875, 0.01
        %v1966 = vmul.f32 %v1877, 0.01
        %v1967 = vmul.f32 %v1881, 0.01
        %v1968 = vmul.f32 %v1883, 0.01
        %v1969 = vmul.f32 %v1885, 0.01
        %v1970 = vmul.f32 %v1887, 0.01
        %v1971 = vmul.f32 %v1891, 0.01
        %v1972 = vmul.f32 %v1893, 0.01
        %v1973 = vmul.f32 %v1895, 0.01
        %v1974 = vmul.f32 %v1897, 0.01
        %v1975 = vmul.f32 %v1901, 0.01
        %v1976 = vmul.f32 %v1903, 0.01
        %v1977 = vmul.f32 %v1905, 0.01
        %v1978 = vmul.f32 %v1907, 0.01
        %v1979 = vmul.f32 %v1911, 0.01
        %v1980 = vmul.f32 %v1913, 0.01
        %v1981 = vmul.f32 %v1915, 0.01
        %v1982 = vmul.f32 %v1917, 0.01
        %v1983 = vsel %vm1919, %v1841, %v1951
        %v1984 = vsel %vm1920, %v1843, %v1952
        %v1985 = vsel %vm1921, %v1845, %v1953
        %v1986 = vsel %vm1922, %v1847, %v1954
        %v1987 = vsel %vm1923, %v1851, %v1955
        %v1988 = vsel %vm1924, %v1853, %v1956
        %v1989 = vsel %vm1925, %v1855, %v1957
        %v1990 = vsel %vm1926, %v1857, %v1958
        %v1991 = vsel %vm1927, %v1861, %v1959
        %v1992 = vsel %vm1928, %v1863, %v1960
        %v1993 = vsel %vm1929, %v1865, %v1961
        %v1994 = vsel %vm1930, %v1867, %v1962
        %v1995 = vsel %vm1931, %v1871, %v1963
        %v1996 = vsel %vm1932, %v1873, %v1964
        %v1997 = vsel %vm1933, %v1875, %v1965
        %v1998 = vsel %vm1934, %v1877, %v1966
        %v1999 = vsel %vm1935, %v1881, %v1967
        %v2000 = vsel %vm1936, %v1883, %v1968
        %v2001 = vsel %vm1937, %v1885, %v1969
        %v2002 = vsel %vm1938, %v1887, %v1970
        %v2003 = vsel %vm1939, %v1891, %v1971
        %v2004 = vsel %vm1940, %v1893, %v1972
        %v2005 = vsel %vm1941, %v1895, %v1973
        %v2006 = vsel %vm1942, %v1897, %v1974
        %v2007 = vsel %vm1943, %v1901, %v1975
        %v2008 = vsel %vm1944, %v1903, %v1976
        %v2009 = vsel %vm1945, %v1905, %v1977
        %v2010 = vsel %vm1946, %v1907, %v1978
        %v2011 = vsel %vm1947, %v1911, %v1979
        %v2012 = vsel %vm1948, %v1913, %v1980
        %v2013 = vsel %vm1949, %v1915, %v1981
        %v2014 = vsel %vm1950, %v1917, %v1982
        %v2015 = vpack.c.bf16 %v1985, %v1983
        %v2016 = vpack.c.bf16 %v1986, %v1984
        %v2017 = vpack.c.bf16 %v1989, %v1987
        %v2018 = vpack.c.bf16 %v1990, %v1988
        %v2019 = vpack.c.bf16 %v1993, %v1991
        %v2020 = vpack.c.bf16 %v1994, %v1992
        %v2021 = vpack.c.bf16 %v1997, %v1995
        %v2022 = vpack.c.bf16 %v1998, %v1996
        %v2023 = vpack.c.bf16 %v2001, %v1999
        %v2024 = vpack.c.bf16 %v2002, %v2000
        %v2025 = vpack.c.bf16 %v2005, %v2003
        %v2026 = vpack.c.bf16 %v2006, %v2004
        %v2027 = vpack.c.bf16 %v2009, %v2007
        %v2028 = vpack.c.bf16 %v2010, %v2008
        %v2029 = vpack.c.bf16 %v2013, %v2011
        %v2030 = vpack.c.bf16 %v2014, %v2012
        %v2031 = vld [vmem:[#allocation7] sm:$0xf]
        %v2032 = vld [vmem:[#allocation7 + $0x4] sm:$0xf]
        %v2033 = vld [vmem:[#allocation7 + $0x8] sm:$0xf]
        %v2034 = vld [vmem:[#allocation7 + $0xc] sm:$0xf]
        %v2035 = vld [vmem:[#allocation7 + $0x10] sm:$0xf]
        %v2036 = vld [vmem:[#allocation7 + $0x14] sm:$0xf]
        %v2037 = vld [vmem:[#allocation7 + $0x18] sm:$0xf]
        %v2038 = vld [vmem:[#allocation7 + $0x1c] sm:$0xf]
        %v2039 = vld [vmem:[#allocation7 + $0x20] sm:$0xf]
        %v2040 = vld [vmem:[#allocation7 + $0x24] sm:$0xf]
        %v2041 = vld [vmem:[#allocation7 + $0x28] sm:$0xf]
        %v2042 = vld [vmem:[#allocation7 + $0x2c] sm:$0xf]
        %v2043 = vld [vmem:[#allocation7 + $0x30] sm:$0xf]
        %v2044 = vld [vmem:[#allocation7 + $0x34] sm:$0xf]
        %v2045 = vld [vmem:[#allocation7 + $0x38] sm:$0xf]
        %v2046 = vld [vmem:[#allocation7 + $0x3c] sm:$0xf]
        %v2047 = vld [vmem:[#allocation7 + $0x40] sm:$0xf]
        %v2048 = vld [vmem:[#allocation7 + $0x44] sm:$0xf]
        %v2049 = vld [vmem:[#allocation7 + $0x48] sm:$0xf]
        %v2050 = vld [vmem:[#allocation7 + $0x4c] sm:$0xf]
        %v2051 = vld [vmem:[#allocation7 + $0x50] sm:$0xf]
        %v2052 = vld [vmem:[#allocation7 + $0x54] sm:$0xf]
        %v2053 = vld [vmem:[#allocation7 + $0x58] sm:$0xf]
        %v2054 = vld [vmem:[#allocation7 + $0x5c] sm:$0xf]
        %v2055 = vld [vmem:[#allocation7 + $0x60] sm:$0xf]
        %v2056 = vld [vmem:[#allocation7 + $0x64] sm:$0xf]
        %v2057 = vld [vmem:[#allocation7 + $0x68] sm:$0xf]
        %v2058 = vld [vmem:[#allocation7 + $0x6c] sm:$0xf]
        %v2059 = vld [vmem:[#allocation7 + $0x70] sm:$0xf]
        %v2060 = vld [vmem:[#allocation7 + $0x74] sm:$0xf]
        %v2061 = vld [vmem:[#allocation7 + $0x78] sm:$0xf]
        %v2062 = vld [vmem:[#allocation7 + $0x7c] sm:$0xf]
        %v2063 = vld [vmem:[%s10] sm:$0x1]
        %v2065 = vlaneseq
        %v2066 = vshrl.u32 %v2065, 7
        %v2067 = vsub.s32 0, %v2066
        %v2068 = vrot.slane %v2063, %v2067
        %v2102 = vunpack.c.l.b16 %v2031
        %v2103 = vunpack.c.l.b16 %v2032
        %v2104 = vunpack.c.l.b16 %v2033
        %v2105 = vunpack.c.l.b16 %v2034
        %v2106 = vunpack.c.l.b16 %v2035
        %v2107 = vunpack.c.l.b16 %v2036
        %v2108 = vunpack.c.l.b16 %v2037
        %v2109 = vunpack.c.l.b16 %v2038
        %v2110 = vunpack.c.l.b16 %v2039
        %v2111 = vunpack.c.l.b16 %v2040
        %v2112 = vunpack.c.l.b16 %v2041
        %v2113 = vunpack.c.l.b16 %v2042
        %v2114 = vunpack.c.l.b16 %v2043
        %v2115 = vunpack.c.l.b16 %v2044
        %v2116 = vunpack.c.l.b16 %v2045
        %v2117 = vunpack.c.l.b16 %v2046
        %v2118 = vunpack.c.l.b16 %v2047
        %v2119 = vunpack.c.l.b16 %v2048
        %v2120 = vunpack.c.l.b16 %v2049
        %v2121 = vunpack.c.l.b16 %v2050
        %v2122 = vunpack.c.l.b16 %v2051
        %v2123 = vunpack.c.l.b16 %v2052
        %v2124 = vunpack.c.l.b16 %v2053
        %v2125 = vunpack.c.l.b16 %v2054
        %v2126 = vunpack.c.l.b16 %v2055
        %v2127 = vunpack.c.l.b16 %v2056
        %v2128 = vunpack.c.l.b16 %v2057
        %v2129 = vunpack.c.l.b16 %v2058
        %v2130 = vunpack.c.l.b16 %v2059
        %v2131 = vunpack.c.l.b16 %v2060
        %v2132 = vunpack.c.l.b16 %v2061
        %v2133 = vunpack.c.l.b16 %v2062
        %v2134 = vpack.c.b16 %v2103, %v2102
        %v2135 = vpack.c.b16 %v2105, %v2104
        %v2136 = vpack.c.b16 %v2107, %v2106
        %v2137 = vpack.c.b16 %v2109, %v2108
        %v2138 = vpack.c.b16 %v2111, %v2110
        %v2139 = vpack.c.b16 %v2113, %v2112
        %v2140 = vpack.c.b16 %v2115, %v2114
        %v2141 = vpack.c.b16 %v2117, %v2116
        %v2142 = vpack.c.b16 %v2119, %v2118
        %v2143 = vpack.c.b16 %v2121, %v2120
        %v2144 = vpack.c.b16 %v2123, %v2122
        %v2145 = vpack.c.b16 %v2125, %v2124
        %v2146 = vpack.c.b16 %v2127, %v2126
        %v2147 = vpack.c.b16 %v2129, %v2128
        %v2148 = vpack.c.b16 %v2131, %v2130
        %v2149 = vpack.c.b16 %v2133, %v2132
        %2166 = vmatprep.subr.bf16.mxu0 0
        %2167 = vmatpush1.bf16.msra.mxu0 %v2134
        %2168 = vmatprep.subr.bf16.mxu0 0
        %2169 = vmatpush1.bf16.msra.mxu0 %v2135
        %2170 = vmatprep.subr.bf16.mxu0 0
        %2171 = vmatpush1.bf16.msra.mxu0 %v2136
        %2172 = vmatprep.subr.bf16.mxu0 0
        %2173 = vmatpush1.bf16.msra.mxu0 %v2137
        %2174 = vmatprep.subr.bf16.mxu0 0
        %2175 = vmatpush1.bf16.msra.mxu0 %v2138
        %2176 = vmatprep.subr.bf16.mxu0 0
        %2177 = vmatpush1.bf16.msra.mxu0 %v2139
        %2178 = vmatprep.subr.bf16.mxu0 0
        %2179 = vmatpush1.bf16.msra.mxu0 %v2140
        %2180 = vmatprep.subr.bf16.mxu0 0
        %2181 = vmatpush1.bf16.msra.mxu0 %v2141
        %2182 = vmatprep.subr.bf16.mxu0 0
        %2183 = vmatpush1.bf16.msra.mxu0 %v2142
        %2184 = vmatprep.subr.bf16.mxu0 0
        %2185 = vmatpush1.bf16.msra.mxu0 %v2143
        %2186 = vmatprep.subr.bf16.mxu0 0
        %2187 = vmatpush1.bf16.msra.mxu0 %v2144
        %2188 = vmatprep.subr.bf16.mxu0 0
        %2189 = vmatpush1.bf16.msra.mxu0 %v2145
        %2190 = vmatprep.subr.bf16.mxu0 0
        %2191 = vmatpush1.bf16.msra.mxu0 %v2146
        %2192 = vmatprep.subr.bf16.mxu0 0
        %2193 = vmatpush1.bf16.msra.mxu0 %v2147
        %2194 = vmatprep.subr.bf16.mxu0 0
        %2195 = vmatpush1.bf16.msra.mxu0 %v2148
        %2196 = vmatprep.subr.bf16.mxu0 0
        %2197 = vmatpush1.bf16.msra.mxu0 %v2149
        %2198 = vmatprep.mubr.bf16.mxu0 %v2016
        %2199 = vmatmul.mubr.bf16.gmra.mrb[0].mxu0 %v2015
        %v2200 = vpop.f32.mrb[0].mxu0
        %v2201 = vadd.f32 %v2068, %v2200
        %v2202 = vpop.f32.mrb[0].mxu0
        %v2203 = vpop.f32.mrb[0].mxu0
        %v2204 = vadd.f32 %v2068, %v2203
        %v2205 = vpop.f32.mrb[0].mxu0
        %2206 = vmatprep.mubr.bf16.mxu0 %v2018
        %2207 = vmatmul.mubr.bf16.gmra.mrb[0].mxu0 %v2017
        %v2208 = vpop.f32.mrb[0].mxu0
        %v2209 = vadd.f32 %v2068, %v2208
        %v2210 = vpop.f32.mrb[0].mxu0
        %v2211 = vpop.f32.mrb[0].mxu0
        %v2212 = vadd.f32 %v2068, %v2211
        %v2213 = vpop.f32.mrb[0].mxu0
        %2214 = vmatprep.mubr.bf16.mxu0 %v2020
        %2215 = vmatmul.mubr.bf16.gmra.mrb[0].mxu0 %v2019
        %v2216 = vpop.f32.mrb[0].mxu0
        %v2217 = vadd.f32 %v2068, %v2216
        %v2218 = vpop.f32.mrb[0].mxu0
        %v2219 = vpop.f32.mrb[0].mxu0
        %v2220 = vadd.f32 %v2068, %v2219
        %v2221 = vpop.f32.mrb[0].mxu0
        %2222 = vmatprep.mubr.bf16.mxu0 %v2022
        %2223 = vmatmul.mubr.bf16.gmra.mrb[0].mxu0 %v2021
        %v2224 = vpop.f32.mrb[0].mxu0
        %v2225 = vadd.f32 %v2068, %v2224
        %v2226 = vpop.f32.mrb[0].mxu0
        %v2227 = vpop.f32.mrb[0].mxu0
        %v2228 = vadd.f32 %v2068, %v2227
        %v2229 = vpop.f32.mrb[0].mxu0
        %2230 = vmatprep.mubr.bf16.mxu0 %v2024
        %2231 = vmatmul.mubr.bf16.gmra.mrb[0].mxu0 %v2023
        %v2232 = vpop.f32.mrb[0].mxu0
        %v2233 = vadd.f32 %v2068, %v2232
        %v2234 = vpop.f32.mrb[0].mxu0
        %v2235 = vpop.f32.mrb[0].mxu0
        %v2236 = vadd.f32 %v2068, %v2235
        %v2237 = vpop.f32.mrb[0].mxu0
        %2238 = vmatprep.mubr.bf16.mxu0 %v2026
        %2239 = vmatmul.mubr.bf16.gmra.mrb[0].mxu0 %v2025
        %v2240 = vpop.f32.mrb[0].mxu0
        %v2241 = vadd.f32 %v2068, %v2240
        %v2242 = vpop.f32.mrb[0].mxu0
        %v2243 = vpop.f32.mrb[0].mxu0
        %v2244 = vadd.f32 %v2068, %v2243
        %v2245 = vpop.f32.mrb[0].mxu0
        %2246 = vmatprep.mubr.bf16.mxu0 %v2028
        %2247 = vmatmul.mubr.bf16.gmra.mrb[0].mxu0 %v2027
        %v2248 = vpop.f32.mrb[0].mxu0
        %v2249 = vadd.f32 %v2068, %v2248
        %v2250 = vpop.f32.mrb[0].mxu0
        %v2251 = vpop.f32.mrb[0].mxu0
        %v2252 = vadd.f32 %v2068, %v2251
        %v2253 = vpop.f32.mrb[0].mxu0
        %2254 = vmatprep.mubr.bf16.mxu0 %v2030
        %2255 = vmatmul.mubr.bf16.gmra.mrb[0].mxu0 %v2029
        %v2256 = vpop.f32.mrb[0].mxu0
        %v2257 = vadd.f32 %v2068, %v2256
        %v2258 = vpop.f32.mrb[0].mxu0
        %v2259 = vpop.f32.mrb[0].mxu0
        %v2260 = vadd.f32 %v2068, %v2259
        %v2261 = vpop.f32.mrb[0].mxu0
        %2262 = vdwg.mxu0
        %v2263 = vtanh.pop %v2201
        %v2264 = vtanh.pop %v2204
        %v2265 = vtanh.pop %v2209
        %v2266 = vtanh.pop %v2212
        %v2267 = vtanh.pop %v2217
        %v2268 = vtanh.pop %v2220
        %v2269 = vtanh.pop %v2225
        %v2270 = vtanh.pop %v2228
        %v2271 = vtanh.pop %v2233
        %v2272 = vtanh.pop %v2236
        %v2273 = vtanh.pop %v2241
        %v2274 = vtanh.pop %v2244
        %v2275 = vtanh.pop %v2249
        %v2276 = vtanh.pop %v2252
        %v2277 = vtanh.pop %v2257
        %v2278 = vtanh.pop %v2260
        %2279 = vst [vmem:[%s424] sm:$0xff] %v2263
        %2280 = vst [vmem:[%s424 + $0x8] sm:$0xff] %v2264
        %2281 = vst [vmem:[%s424 + $0x10] sm:$0xff] %v2265
        %2282 = vst [vmem:[%s424 + $0x18] sm:$0xff] %v2266
        %2283 = vst [vmem:[%s424 + $0x20] sm:$0xff] %v2267
        %2284 = vst [vmem:[%s424 + $0x28] sm:$0xff] %v2268
        %2285 = vst [vmem:[%s424 + $0x30] sm:$0xff] %v2269
        %2286 = vst [vmem:[%s424 + $0x38] sm:$0xff] %v2270
        %2287 = vst [vmem:[%s424 + $0x40] sm:$0xff] %v2271
        %2288 = vst [vmem:[%s424 + $0x48] sm:$0xff] %v2272
        %2289 = vst [vmem:[%s424 + $0x50] sm:$0xff] %v2273
        %2290 = vst [vmem:[%s424 + $0x58] sm:$0xff] %v2274
        %2291 = vst [vmem:[%s424 + $0x60] sm:$0xff] %v2275
        %2292 = vst [vmem:[%s424 + $0x68] sm:$0xff] %v2276
        %2293 = vst [vmem:[%s424 + $0x70] sm:$0xff] %v2277
        %2294 = vst [vmem:[%s424 + $0x78] sm:$0xff] %v2278
        %s2295 = sand.u32 %s271, 1
        %s2296 = scalar_lea.sflag [#allocation4], %s2295
        %s2297 = sand.u32 %s271, 1
        %s2298 = smul.addr %s2297, 128
        %s2299 = scalar_lea.vmem [#allocation8], %s2298
        // Predicated region
        $region77: #{tpu_custom_call.1} parent=63 // pred_check
          %p2300 = pneg %p281
        $region78: #{tpu_custom_call.1} parent=63 // pred_check_branch
          %2302 = sbr.rel (%p2300) target = $region80
        $region79: #{tpu_custom_call.1} parent=63 // pred_region
          %s2303 = smul.u32 16, %s27
          %s2305 = ssub.s32 2048, 2048
          %2306 = vsyncadd %s2296, %s2305
          %s2307 = smul.addr %s2303, 128
          %s2308 = scalar_lea.hbm %s11, %s2307
          %s2309 = sshll.u32 %s2299, 4
          %s2310 = int_to_ptr.vmem [resolvable:$true] %s2309
          %2315 = dma.vmem_to_hbm [thread:$0]  %s2310, 2048, %s2308, %s2296, 128, 128, 8
        $region80: #{tpu_custom_call.1} parent=63 // pred_fallthru
          _
      $region64: #{tpu_custom_call.1} parent=5 // pred_fallthru
        _
      %p2316 = scmp.le.s32.totalorder 2, %s22
      // Predicated region
      $region81: #{tpu_custom_call.1} parent=5 // pred_check
        %p2317 = pneg %p2316
      $region82: #{tpu_custom_call.1} parent=5 // pred_check_branch
        %2319 = sbr.rel (%p2317) target = $region84
      $region83: #{tpu_custom_call.1} parent=5 // pred_region
        %s2320 = ssub.s32 %s22, 2
        // Predicated region
        $region85: #{tpu_custom_call.1} parent=83 // pred_check
          %p2321 = pneg %p287
        $region86: #{tpu_custom_call.1} parent=83 // pred_check_branch
          %2323 = sbr.rel (%p2321) target = $region88
        $region87: #{tpu_custom_call.1} parent=83 // pred_region
          %s2324 = sand.u32 %s272, 1
          %s2325 = scalar_lea.sflag [#allocation4], %s2324
          %s2326 = sand.u32 %s272, 1
          %s2327 = smul.addr %s2326, 128
          %s2328 = scalar_lea.vmem [#allocation8], %s2327
          %2329 = dma.done %s2325, 2048
        $region88: #{tpu_custom_call.1} parent=83 // pred_fallthru
          _
      $region84: #{tpu_custom_call.1} parent=5 // pred_fallthru
        _
    $region6: #{tpu_custom_call.1} parent=1 // loop_footer
      %s26 = sadd.s32 1, %s22
    $region7: #{tpu_custom_call.1} parent=1 // loop_footer_branch
      %21 = sbr.rel target = $region3
    $region8: #{tpu_custom_call.1} parent=1 // loop_exit
      _
    %2330 = vsyncpa [#allocation3], 1
    %s2331 = scalar_lea.sflag [#allocation3], 1
    %2332 = vsyncpa %s2331, 1
    %2333 = vsyncpa [#allocation6], 1
    %2334 = vsyncpa [#allocation4], 1
    %s2335 = scalar_lea.sflag [#allocation4], 1
    %2336 = vsyncpa %s2335, 1

</llo_original>
